<compile_context>
chip_gen: v7x
topology: tpu7x:2x2x1
jax: 0.10.0
libtpu: 0.0.40
codegen_flags: <defaults>
</compile_context>

<pallas_src>
import functools

import jax
import jax.numpy as jnp
from jax.experimental import pallas as pl
from jax.experimental.pallas import tpu as pltpu


def _vmem_limit_bytes():
    """Per-chip VMEM limit with headroom (v7x: 48 MiB, v5e/v6e: 96 MiB)."""
    try:
        cap = int(getattr(pltpu.get_tpu_info(), "vmem_capacity_bytes", 128 << 20))
    except Exception:
        cap = 128 << 20
    return max(32 << 20, min((cap * 3) // 4, 96 << 20))


def _pick_row_chunk(ho, wc, k_dim, cout, budget=6 << 20):
    """Largest divisor of ho whose per-chunk staging (K,P) + (Cout,P) fits budget."""
    best = 1
    for d in range(1, ho + 1):
        if ho % d:
            continue
        pc = d * wc
        need = k_dim * pc * 2 + 2 * cout * pc * 4   # bf16 X2 staging + f32 acc/copy
        if need <= budget:
            best = d
    return best


def _stage_kernel(x_ref, w_ref, b_ref, gam_ref, bet_ref, gsum_ref, mask_ref,
                  o_ref, yacc_ref, *, taps, wc, wo, ho, row_chunk, cout,
                  eps, slope, count, canvas_out, out_off):
    """Fused [conv -> GroupNorm -> LeakyReLU] for one sample.

    x_ref   : (1, C, Lin)  bf16 flattened padded canvas (row width = wc)
    w_ref   : (cout, taps^2 * C) bf16 folded conv weights
    b/gam/bet_ref : (cout, 1) f32
    gsum_ref: (cout, cout) f32 block-diagonal "sum my group" matrix
    mask_ref: (1, row_chunk*wc) f32 column-validity mask (1 where col < wo)
    o_ref   : canvas_out -> (1, cout, (ho+3)*wc) bf16 zero-bordered canvas
              else       -> (1, cout, ho*wo)     f32  flat NCHW output
    yacc_ref: (n_chunks, cout, row_chunk*wc) f32 resident conv output
    """
    n_chunks = ho // row_chunk
    pc = row_chunk * wc

    w = w_ref[...]                         # (cout, K) bf16
    bias = b_ref[...]                      # (cout, 1) f32
    mask = mask_ref[...]                   # (1, pc) f32

    # ---- pass over row chunks: conv (single folded-K matmul) + running stats
    s = jnp.zeros((cout, 1), jnp.float32)
    ss = jnp.zeros((cout, 1), jnp.float32)
    for cc in range(n_chunks):
        base = cc * pc
        pieces = []
        for di in range(taps):
            for dj in range(taps):
                off = base + di * wc + dj              # pure lane shift per tap
                pieces.append(x_ref[0, :, off:off + pc])
        x2 = jnp.concatenate(pieces, axis=0)           # (taps^2*C, pc) bf16
        y = jnp.dot(w, x2, preferred_element_type=jnp.float32) + bias  # (cout, pc)
        yacc_ref[cc] = y
        ym = y * mask                                  # exclude halo/garbage cols
        s = s + jnp.sum(ym, axis=1, keepdims=True)
        ss = ss + jnp.sum(ym * y, axis=1, keepdims=True)

    # ---- GroupNorm scale / shift (group-reduce + broadcast via gsum matrix)
    st = jnp.concatenate([s, ss], axis=1)                              # (cout, 2)
    g = jnp.dot(gsum_ref[...], st, preferred_element_type=jnp.float32)  # (cout, 2)
    inv_cnt = 1.0 / count
    mean_c = g[:, 0:1] * inv_cnt
    ex2_c = g[:, 1:2] * inv_cnt
    var_c = jnp.maximum(ex2_c - mean_c * mean_c, 0.0)
    scale = gam_ref[...] * jax.lax.rsqrt(var_c + eps)
    shift = bet_ref[...] - mean_c * scale

    if canvas_out:
        # zero the border strips of the stage-2 input canvas once
        l_out = o_ref.shape[2]
        o_ref[0, :, 0:out_off] = jnp.zeros((cout, out_off), o_ref.dtype)
        tail0 = out_off + ho * wc
        o_ref[0, :, tail0:l_out] = jnp.zeros((cout, l_out - tail0), o_ref.dtype)

    # ---- normalize + LeakyReLU + store (reads the resident conv output once)
    for cc in range(n_chunks):
        z = yacc_ref[cc] * scale + shift
        z = jnp.where(z > 0, z, slope * z)
        if canvas_out:
            # interior of the zero-bordered canvas; masked cols become the zero
            # left/right border of the next stage.
            a0 = out_off + cc * pc
            o_ref[0, :, a0:a0 + pc] = (z * mask).astype(o_ref.dtype)
        else:
            # compact the padded columns away -> lane-dense flat NCHW store
            for rl in range(row_chunk):
                r = cc * row_chunk + rl
                o_ref[0, :, r * wo:(r + 1) * wo] = (
                    z[:, rl * wc: rl * wc + wo].astype(o_ref.dtype))


def _stage_call(x, wmat, bias, gamma, beta, gsum, *, taps, wc, wo, ho, cout,
                groups, eps, slope, canvas_out):
    """One fused conv->GN->LeakyReLU stage over a flattened channel-major canvas."""
    n, c_in, l_in = x.shape
    k_dim = wmat.shape[1]
    row_chunk = _pick_row_chunk(ho, wc, k_dim, cout)
    n_chunks = ho // row_chunk
    pc = row_chunk * wc

    mask = jnp.tile(jnp.arange(wc) < wo, row_chunk).astype(jnp.float32).reshape(1, pc)
    cpg = cout // groups
    count = float(ho * wo * cpg)
    out_off = wc + 1                                    # (+1 row, +1 col) canvas offset

    if canvas_out:
        l_out = (ho + 3) * wc
        out_shape = jax.ShapeDtypeStruct((n, cout, l_out), jnp.bfloat16)
    else:
        l_out = ho * wo
        out_shape = jax.ShapeDtypeStruct((n, cout, l_out), jnp.float32)

    kernel = functools.partial(
        _stage_kernel, taps=taps, wc=wc, wo=wo, ho=ho, row_chunk=row_chunk,
        cout=cout, eps=eps, slope=slope, count=count,
        canvas_out=canvas_out, out_off=out_off)

    bias2 = bias.reshape(cout, 1).astype(jnp.float32)
    gamma2 = gamma.reshape(cout, 1).astype(jnp.float32)
    beta2 = beta.reshape(cout, 1).astype(jnp.float32)

    return pl.pallas_call(
        kernel,
        out_shape=out_shape,
        grid=(n,),
        in_specs=[
            pl.BlockSpec((1, c_in, l_in), lambda i: (i, 0, 0)),     # input canvas
            pl.BlockSpec((cout, k_dim), lambda i: (0, 0)),          # folded weights
            pl.BlockSpec((cout, 1), lambda i: (0, 0)),              # bias
            pl.BlockSpec((cout, 1), lambda i: (0, 0)),              # gamma
            pl.BlockSpec((cout, 1), lambda i: (0, 0)),              # beta
            pl.BlockSpec((cout, cout), lambda i: (0, 0)),           # group-sum matrix
            pl.BlockSpec((1, pc), lambda i: (0, 0)),                # column mask
        ],
        out_specs=pl.BlockSpec((1, cout, l_out), lambda i: (i, 0, 0)),
        scratch_shapes=[pltpu.VMEM((n_chunks, cout, pc), jnp.float32)],
        compiler_params=pltpu.CompilerParams(
            dimension_semantics=("parallel",),
            vmem_limit_bytes=_vmem_limit_bytes()),
    )(x, wmat, bias2, gamma2, beta2, gsum, mask)


def _stage1_weight(w):
    """(3,3,Cin,Cout) stride-2 weights -> (4, 4*Cin, Cout) taps of the equivalent
    stride-1 2x2 conv acting on the space-to-depth (phase-split) input."""
    k = w.shape[0]
    cin, cout = w.shape[2], w.shape[3]
    wk = jnp.zeros((2, 2, 2, 2, cin, cout), w.dtype)    # (di, dj, a, b, c, o)
    for di in range(2):
        for dj in range(2):
            for a in range(2):
                for b in range(2):
                    ki, kj = 2 * di + a, 2 * dj + b
                    if ki < k and kj < k:
                        wk = wk.at[di, dj, a, b].set(w[ki, kj])
    return wk.reshape(4, 4 * cin, cout)                 # (tap, chan, cout)


def down_block_forward(x_nchw, params, *, groups=16, eps=1e-5, slope=0.2):
    """Forward of DownBlock. Input/output are NCHW (PyTorch convention)."""
    w1, b1, g1, bt1, w2, b2, g2, bt2 = params
    n, cin, h, w = x_nchw.shape
    cout = w1.shape[-1]
    assert cout % groups == 0

    ho = (h - 1) // 2 + 1
    wo = (w - 1) // 2 + 1
    wc = wo + 2                       # shared canvas row width (== stage-2 padded width)

    # ---- stage-1 input: space-to-depth, channel-major, flattened padded canvas
    hp, wp = 2 * (ho + 1), 2 * (wo + 1)
    xp = jnp.pad(x_nchw.astype(jnp.float32),
                 ((0, 0), (0, 0), (1, hp - h - 1), (1, wp - w - 1)))
    xsd = (xp.reshape(n, cin, ho + 1, 2, wo + 1, 2)
             .transpose(0, 3, 5, 1, 2, 4)
             .reshape(n, 4 * cin, ho + 1, wo + 1))
    x1 = jnp.pad(xsd, ((0, 0), (0, 0), (0, 1), (0, 1)))               # -> (ho+2, wc)
    x1 = x1.reshape(n, 4 * cin, (ho + 2) * wc).astype(jnp.bfloat16)

    # ---- folded (Cout, K) weights, K ordered tap-major / channel-minor
    w1f = (_stage1_weight(w1).transpose(2, 0, 1)
           .reshape(cout, 4 * 4 * cin).astype(jnp.bfloat16))
    w2f = (w2.reshape(9, cout, cout).transpose(2, 0, 1)
           .reshape(cout, 9 * cout).astype(jnp.bfloat16))

    cpg = cout // groups
    gid = jnp.arange(cout) // cpg
    gsum = (gid[:, None] == gid[None, :]).astype(jnp.float32)         # (cout, cout)

    # ---- stage 1: stride-2 conv (as 2x2 s1 conv on s2d) + GN + LeakyReLU,
    #      written directly into the zero-bordered stage-2 input canvas.
    y1 = _stage_call(x1, w1f, b1, g1, bt1, gsum, taps=2, wc=wc, wo=wo, ho=ho,
                     cout=cout, groups=groups, eps=eps, slope=slope,
                     canvas_out=True)                  # (n, cout, (ho+3)*wc) bf16

    # ---- stage 2: stride-1 3x3 conv + GN + LeakyReLU, flat NCHW output.
    y2 = _stage_call(y1, w2f, b2, g2, bt2, gsum, taps=3, wc=wc, wo=wo, ho=ho,
                     cout=cout, groups=groups, eps=eps, slope=slope,
                     canvas_out=False)                 # (n, cout, ho*wo) f32
    return y2.reshape(n, cout, ho, wo)


def init_params(key, in_ch, out_ch, k=3):
    k1, k2, k3, k4 = jax.random.split(key, 4)
    s1 = 1.0 / jnp.sqrt(in_ch * k * k)
    s2 = 1.0 / jnp.sqrt(out_ch * k * k)
    # conv weights in (kh, kw, cin, cout) layout (permuted PyTorch (cout,cin,kh,kw))
    w1 = jax.random.uniform(k1, (k, k, in_ch, out_ch), jnp.float32, -s1, s1)
    b1 = jax.random.uniform(k2, (out_ch,), jnp.float32, -s1, s1)
    w2 = jax.random.uniform(k3, (k, k, out_ch, out_ch), jnp.float32, -s2, s2)
    b2 = jax.random.uniform(k4, (out_ch,), jnp.float32, -s2, s2)
    # GroupNorm affine params: PyTorch default init (ones / zeros)
    g1 = jnp.ones((out_ch,), jnp.float32)
    bt1 = jnp.zeros((out_ch,), jnp.float32)
    g2 = jnp.ones((out_ch,), jnp.float32)
    bt2 = jnp.zeros((out_ch,), jnp.float32)
    return (w1, b1, g1, bt1, w2, b2, g2, bt2)


if __name__ == "__main__":
    N, in_ch, out_ch, H, W = 2, 4, 32, 16, 16   # out_ch multiple of 16 for GroupNorm(16)
    key = jax.random.PRNGKey(0)
    kx, kp = jax.random.split(key)
    x = jax.random.normal(kx, (N, in_ch, H, W), jnp.float32)   # NCHW like PyTorch
    params = init_params(kp, in_ch, out_ch)

    out = jax.jit(down_block_forward)(x, params)
    out = jax.block_until_ready(out)
    assert out.shape == (N, out_ch, H // 2, W // 2), out.shape
    assert bool(jnp.all(jnp.isfinite(out)))
    print("KERNEL_OK")
</pallas_src>

<mosaic_0001>
module attributes {stable_mosaic.version = 11 : i64} {
  func.func @_stage_kernel(%arg0: i32, %arg1: memref<1x32x110xbf16, #tpu.memory_space<vmem>>, %arg2: memref<32x288xbf16, #tpu.memory_space<vmem>>, %arg3: memref<32x1xf32, #tpu.memory_space<vmem>>, %arg4: memref<32x1xf32, #tpu.memory_space<vmem>>, %arg5: memref<32x1xf32, #tpu.memory_space<vmem>>, %arg6: memref<32x32xf32, #tpu.memory_space<vmem>>, %arg7: memref<1x80xf32, #tpu.memory_space<vmem>>, %arg8: memref<1x32x64xf32, #tpu.memory_space<vmem>>, %arg9: memref<1x32x80xf32, #tpu.memory_space<vmem>>) attributes {dimension_semantics = [#tpu.dimension_semantics<parallel>], iteration_bounds = array<i64: 2>, scalar_prefetch = 0 : i64, scratch_operands = 1 : i64, tpu.core_type = #tpu.core_type<tc>, window_params = [{transform_indices = @transform_0, window_bounds = array<i64: 1, 32, 110>}, {pipeline_mode = #tpu.pipeline_mode<synchronous>, transform_indices = @transform_1, window_bounds = array<i64: 32, 288>}, {pipeline_mode = #tpu.pipeline_mode<synchronous>, transform_indices = @transform_2, window_bounds = array<i64: 32, 1>}, {pipeline_mode = #tpu.pipeline_mode<synchronous>, transform_indices = @transform_3, window_bounds = array<i64: 32, 1>}, {pipeline_mode = #tpu.pipeline_mode<synchronous>, transform_indices = @transform_4, window_bounds = array<i64: 32, 1>}, {pipeline_mode = #tpu.pipeline_mode<synchronous>, transform_indices = @transform_5, window_bounds = array<i64: 32, 32>}, {pipeline_mode = #tpu.pipeline_mode<synchronous>, transform_indices = @transform_6, window_bounds = array<i64: 1, 80>}, {transform_indices = @transform_7, window_bounds = array<i64: 1, 32, 64>}]} {
    %c0 = arith.constant 0 : index
    %c0_0 = arith.constant 0 : index
    %0 = vector.load %arg2[%c0, %c0_0] : memref<32x288xbf16, #tpu.memory_space<vmem>>, vector<32x288xbf16>
    %c0_1 = arith.constant 0 : index
    %c0_2 = arith.constant 0 : index
    %1 = vector.load %arg3[%c0_1, %c0_2] : memref<32x1xf32, #tpu.memory_space<vmem>>, vector<32x1xf32>
    %c0_3 = arith.constant 0 : index
    %c0_4 = arith.constant 0 : index
    %2 = vector.load %arg7[%c0_3, %c0_4] : memref<1x80xf32, #tpu.memory_space<vmem>>, vector<1x80xf32>
    %cst = arith.constant 0.000000e+00 : f32
    %3 = vector.broadcast %cst : f32 to vector<32x1xf32>
    %cst_5 = arith.constant 0.000000e+00 : f32
    %4 = vector.broadcast %cst_5 : f32 to vector<32x1xf32>
    %c0_6 = arith.constant 0 : index
    %c0_7 = arith.constant 0 : index
    %c0_8 = arith.constant 0 : index
    %5 = vector.load %arg1[%c0_6, %c0_7, %c0_8] : memref<1x32x110xbf16, #tpu.memory_space<vmem>>, vector<1x32x80xbf16>
    %6 = vector.shape_cast %5 : vector<1x32x80xbf16> to vector<32x80xbf16>
    %c0_9 = arith.constant 0 : index
    %c0_10 = arith.constant 0 : index
    %c1 = arith.constant 1 : index
    %7 = vector.load %arg1[%c0_9, %c0_10, %c1] : memref<1x32x110xbf16, #tpu.memory_space<vmem>>, vector<1x32x80xbf16>
    %8 = vector.shape_cast %7 : vector<1x32x80xbf16> to vector<32x80xbf16>
    %c0_11 = arith.constant 0 : index
    %c0_12 = arith.constant 0 : index
    %c2 = arith.constant 2 : index
    %9 = vector.load %arg1[%c0_11, %c0_12, %c2] : memref<1x32x110xbf16, #tpu.memory_space<vmem>>, vector<1x32x80xbf16>
    %10 = vector.shape_cast %9 : vector<1x32x80xbf16> to vector<32x80xbf16>
    %c0_13 = arith.constant 0 : index
    %c0_14 = arith.constant 0 : index
    %c10 = arith.constant 10 : index
    %11 = vector.load %arg1[%c0_13, %c0_14, %c10] : memref<1x32x110xbf16, #tpu.memory_space<vmem>>, vector<1x32x80xbf16>
    %12 = vector.shape_cast %11 : vector<1x32x80xbf16> to vector<32x80xbf16>
    %c0_15 = arith.constant 0 : index
    %c0_16 = arith.constant 0 : index
    %c11 = arith.constant 11 : index
    %13 = vector.load %arg1[%c0_15, %c0_16, %c11] : memref<1x32x110xbf16, #tpu.memory_space<vmem>>, vector<1x32x80xbf16>
    %14 = vector.shape_cast %13 : vector<1x32x80xbf16> to vector<32x80xbf16>
    %c0_17 = arith.constant 0 : index
    %c0_18 = arith.constant 0 : index
    %c12 = arith.constant 12 : index
    %15 = vector.load %arg1[%c0_17, %c0_18, %c12] : memref<1x32x110xbf16, #tpu.memory_space<vmem>>, vector<1x32x80xbf16>
    %16 = vector.shape_cast %15 : vector<1x32x80xbf16> to vector<32x80xbf16>
    %c0_19 = arith.constant 0 : index
    %c0_20 = arith.constant 0 : index
    %c20 = arith.constant 20 : index
    %17 = vector.load %arg1[%c0_19, %c0_20, %c20] : memref<1x32x110xbf16, #tpu.memory_space<vmem>>, vector<1x32x80xbf16>
    %18 = vector.shape_cast %17 : vector<1x32x80xbf16> to vector<32x80xbf16>
    %c0_21 = arith.constant 0 : index
    %c0_22 = arith.constant 0 : index
    %c21 = arith.constant 21 : index
    %19 = vector.load %arg1[%c0_21, %c0_22, %c21] : memref<1x32x110xbf16, #tpu.memory_space<vmem>>, vector<1x32x80xbf16>
    %20 = vector.shape_cast %19 : vector<1x32x80xbf16> to vector<32x80xbf16>
    %c0_23 = arith.constant 0 : index
    %c0_24 = arith.constant 0 : index
    %c22 = arith.constant 22 : index
    %21 = vector.load %arg1[%c0_23, %c0_24, %c22] : memref<1x32x110xbf16, #tpu.memory_space<vmem>>, vector<1x32x80xbf16>
    %22 = vector.shape_cast %21 : vector<1x32x80xbf16> to vector<32x80xbf16>
    %23 = tpu.concatenate %6, %8, %10, %12, %14, %16, %18, %20, %22 in 0 : vector<32x80xbf16>, vector<32x80xbf16>, vector<32x80xbf16>, vector<32x80xbf16>, vector<32x80xbf16>, vector<32x80xbf16>, vector<32x80xbf16>, vector<32x80xbf16>, vector<32x80xbf16> -> vector<288x80xbf16>
    %cst_25 = arith.constant dense<0.000000e+00> : vector<32x80xf32>
    %24 = tpu.matmul %0, %23, %cst_25 {dimension_numbers = #tpu.dot_dimension_numbers<[1], [0], [0], [1], [0, 0, 1, 1], [], []>} : vector<32x288xbf16>, vector<288x80xbf16>, vector<32x80xf32> -> vector<32x80xf32>
    %25 = vector.broadcast %1 : vector<32x1xf32> to vector<32x80xf32>
    %26 = arith.addf %24, %25 : vector<32x80xf32>
    %c0_26 = arith.constant 0 : index
    %c0_27 = arith.constant 0 : index
    %c0_28 = arith.constant 0 : index
    %27 = vector.load %arg9[%c0_26, %c0_27, %c0_28] : memref<1x32x80xf32, #tpu.memory_space<vmem>>, vector<1x32x80xf32>
    %28 = vector.shape_cast %27 : vector<1x32x80xf32> to vector<32x80xf32>
    %29 = vector.shape_cast %26 : vector<32x80xf32> to vector<1x32x80xf32>
    tpu.vector_store %arg9[%c0_26, %c0_27, %c0_28], %29 {strides = array<i32>} : memref<1x32x80xf32, #tpu.memory_space<vmem>>, vector<1x32x80xf32>,
    %30 = vector.broadcast %2 : vector<1x80xf32> to vector<32x80xf32>
    %31 = arith.mulf %26, %30 : vector<32x80xf32>
    %cst_29 = arith.constant dense<0.000000e+00> : vector<32xf32>
    %32 = vector.multi_reduction <add>, %31, %cst_29 [1] : vector<32x80xf32> to vector<32xf32>
    %33 = vector.shape_cast %32 : vector<32xf32> to vector<32x1xf32>
    %34 = arith.addf %3, %33 : vector<32x1xf32>
    %35 = arith.mulf %31, %26 : vector<32x80xf32>
    %cst_30 = arith.constant dense<0.000000e+00> : vector<32xf32>
    %36 = vector.multi_reduction <add>, %35, %cst_30 [1] : vector<32x80xf32> to vector<32xf32>
    %37 = vector.shape_cast %36 : vector<32xf32> to vector<32x1xf32>
    %38 = arith.addf %4, %37 : vector<32x1xf32>
    %39 = tpu.concatenate %34, %38 in 1 : vector<32x1xf32>, vector<32x1xf32> -> vector<32x2xf32>
    %c0_31 = arith.constant 0 : index
    %c0_32 = arith.constant 0 : index
    %40 = vector.load %arg6[%c0_31, %c0_32] : memref<32x32xf32, #tpu.memory_space<vmem>>, vector<32x32xf32>
    %cst_33 = arith.constant dense<0.000000e+00> : vector<32x2xf32>
    %41 = tpu.matmul %40, %39, %cst_33 {dimension_numbers = #tpu.dot_dimension_numbers<[1], [0], [0], [1], [0, 0, 1, 1], [], []>} : vector<32x32xf32>, vector<32x2xf32>, vector<32x2xf32> -> vector<32x2xf32>
    %42 = vector.extract_strided_slice %41 {offsets = [0, 0], sizes = [32, 1], strides = [1, 1]} : vector<32x2xf32> to vector<32x1xf32>
    %cst_34 = arith.constant 7.812500e-03 : f32
    %43 = vector.broadcast %cst_34 : f32 to vector<32x1xf32>
    %44 = arith.mulf %42, %43 : vector<32x1xf32>
    %45 = vector.extract_strided_slice %41 {offsets = [0, 1], sizes = [32, 1], strides = [1, 1]} : vector<32x2xf32> to vector<32x1xf32>
    %cst_35 = arith.constant 7.812500e-03 : f32
    %46 = vector.broadcast %cst_35 : f32 to vector<32x1xf32>
    %47 = arith.mulf %45, %46 : vector<32x1xf32>
    %48 = arith.mulf %44, %44 : vector<32x1xf32>
    %49 = arith.subf %47, %48 : vector<32x1xf32>
    %cst_36 = arith.constant 0.000000e+00 : f32
    %50 = vector.broadcast %cst_36 : f32 to vector<32x1xf32>
    %51 = arith.maximumf %49, %50 : vector<32x1xf32>
    %c0_37 = arith.constant 0 : index
    %c0_38 = arith.constant 0 : index
    %52 = vector.load %arg4[%c0_37, %c0_38] : memref<32x1xf32, #tpu.memory_space<vmem>>, vector<32x1xf32>
    %cst_39 = arith.constant 9.99999974E-6 : f32
    %53 = vector.broadcast %cst_39 : f32 to vector<32x1xf32>
    %54 = arith.addf %51, %53 : vector<32x1xf32>
    %55 = math.rsqrt %54 : vector<32x1xf32>
    %56 = arith.mulf %52, %55 : vector<32x1xf32>
    %c0_40 = arith.constant 0 : index
    %c0_41 = arith.constant 0 : index
    %57 = vector.load %arg5[%c0_40, %c0_41] : memref<32x1xf32, #tpu.memory_space<vmem>>, vector<32x1xf32>
    %58 = arith.mulf %44, %56 : vector<32x1xf32>
    %59 = arith.subf %57, %58 : vector<32x1xf32>
    %c0_42 = arith.constant 0 : index
    %c0_43 = arith.constant 0 : index
    %c0_44 = arith.constant 0 : index
    %60 = vector.load %arg9[%c0_42, %c0_43, %c0_44] : memref<1x32x80xf32, #tpu.memory_space<vmem>>, vector<1x32x80xf32>
    %61 = vector.shape_cast %60 : vector<1x32x80xf32> to vector<32x80xf32>
    %62 = vector.broadcast %56 : vector<32x1xf32> to vector<32x80xf32>
    %63 = arith.mulf %61, %62 : vector<32x80xf32>
    %64 = vector.broadcast %59 : vector<32x1xf32> to vector<32x80xf32>
    %65 = arith.addf %63, %64 : vector<32x80xf32>
    %cst_45 = arith.constant 0.000000e+00 : f32
    %66 = vector.broadcast %cst_45 : f32 to vector<32x80xf32>
    %67 = arith.cmpf ogt, %65, %66 : vector<32x80xf32>
    %cst_46 = arith.constant 2.000000e-01 : f32
    %68 = vector.broadcast %cst_46 : f32 to vector<32x80xf32>
    %69 = arith.mulf %68, %65 : vector<32x80xf32>
    %70 = arith.select %67, %65, %69 : vector<32x80xi1>, vector<32x80xf32>
    %71 = vector.extract_strided_slice %70 {offsets = [0, 0], sizes = [32, 8], strides = [1, 1]} : vector<32x80xf32> to vector<32x8xf32>
    %c0_47 = arith.constant 0 : index
    %c0_48 = arith.constant 0 : index
    %c0_49 = arith.constant 0 : index
    %72 = vector.load %arg8[%c0_47, %c0_48, %c0_49] : memref<1x32x64xf32, #tpu.memory_space<vmem>>, vector<1x32x8xf32>
    %73 = vector.shape_cast %72 : vector<1x32x8xf32> to vector<32x8xf32>
    %74 = vector.shape_cast %71 : vector<32x8xf32> to vector<1x32x8xf32>
    tpu.vector_store %arg8[%c0_47, %c0_48, %c0_49], %74 {strides = array<i32>} : memref<1x32x64xf32, #tpu.memory_space<vmem>>, vector<1x32x8xf32>,
    %75 = vector.extract_strided_slice %70 {offsets = [0, 10], sizes = [32, 8], strides = [1, 1]} : vector<32x80xf32> to vector<32x8xf32>
    %c0_50 = arith.constant 0 : index
    %c0_51 = arith.constant 0 : index
    %c8 = arith.constant 8 : index
    %76 = vector.load %arg8[%c0_50, %c0_51, %c8] : memref<1x32x64xf32, #tpu.memory_space<vmem>>, vector<1x32x8xf32>
    %77 = vector.shape_cast %76 : vector<1x32x8xf32> to vector<32x8xf32>
    %78 = vector.shape_cast %75 : vector<32x8xf32> to vector<1x32x8xf32>
    tpu.vector_store %arg8[%c0_50, %c0_51, %c8], %78 {strides = array<i32>} : memref<1x32x64xf32, #tpu.memory_space<vmem>>, vector<1x32x8xf32>,
    %79 = vector.extract_strided_slice %70 {offsets = [0, 20], sizes = [32, 8], strides = [1, 1]} : vector<32x80xf32> to vector<32x8xf32>
    %c0_52 = arith.constant 0 : index
    %c0_53 = arith.constant 0 : index
    %c16 = arith.constant 16 : index
    %80 = vector.load %arg8[%c0_52, %c0_53, %c16] : memref<1x32x64xf32, #tpu.memory_space<vmem>>, vector<1x32x8xf32>
    %81 = vector.shape_cast %80 : vector<1x32x8xf32> to vector<32x8xf32>
    %82 = vector.shape_cast %79 : vector<32x8xf32> to vector<1x32x8xf32>
    tpu.vector_store %arg8[%c0_52, %c0_53, %c16], %82 {strides = array<i32>} : memref<1x32x64xf32, #tpu.memory_space<vmem>>, vector<1x32x8xf32>,
    %83 = vector.extract_strided_slice %70 {offsets = [0, 30], sizes = [32, 8], strides = [1, 1]} : vector<32x80xf32> to vector<32x8xf32>
    %c0_54 = arith.constant 0 : index
    %c0_55 = arith.constant 0 : index
    %c24 = arith.constant 24 : index
    %84 = vector.load %arg8[%c0_54, %c0_55, %c24] : memref<1x32x64xf32, #tpu.memory_space<vmem>>, vector<1x32x8xf32>
    %85 = vector.shape_cast %84 : vector<1x32x8xf32> to vector<32x8xf32>
    %86 = vector.shape_cast %83 : vector<32x8xf32> to vector<1x32x8xf32>
    tpu.vector_store %arg8[%c0_54, %c0_55, %c24], %86 {strides = array<i32>} : memref<1x32x64xf32, #tpu.memory_space<vmem>>, vector<1x32x8xf32>,
    %87 = vector.extract_strided_slice %70 {offsets = [0, 40], sizes = [32, 8], strides = [1, 1]} : vector<32x80xf32> to vector<32x8xf32>
    %c0_56 = arith.constant 0 : index
    %c0_57 = arith.constant 0 : index
    %c32 = arith.constant 32 : index
    %88 = vector.load %arg8[%c0_56, %c0_57, %c32] : memref<1x32x64xf32, #tpu.memory_space<vmem>>, vector<1x32x8xf32>
    %89 = vector.shape_cast %88 : vector<1x32x8xf32> to vector<32x8xf32>
    %90 = vector.shape_cast %87 : vector<32x8xf32> to vector<1x32x8xf32>
    tpu.vector_store %arg8[%c0_56, %c0_57, %c32], %90 {strides = array<i32>} : memref<1x32x64xf32, #tpu.memory_space<vmem>>, vector<1x32x8xf32>,
    %91 = vector.extract_strided_slice %70 {offsets = [0, 50], sizes = [32, 8], strides = [1, 1]} : vector<32x80xf32> to vector<32x8xf32>
    %c0_58 = arith.constant 0 : index
    %c0_59 = arith.constant 0 : index
    %c40 = arith.constant 40 : index
    %92 = vector.load %arg8[%c0_58, %c0_59, %c40] : memref<1x32x64xf32, #tpu.memory_space<vmem>>, vector<1x32x8xf32>
    %93 = vector.shape_cast %92 : vector<1x32x8xf32> to vector<32x8xf32>
    %94 = vector.shape_cast %91 : vector<32x8xf32> to vector<1x32x8xf32>
    tpu.vector_store %arg8[%c0_58, %c0_59, %c40], %94 {strides = array<i32>} : memref<1x32x64xf32, #tpu.memory_space<vmem>>, vector<1x32x8xf32>,
    %95 = vector.extract_strided_slice %70 {offsets = [0, 60], sizes = [32, 8], strides = [1, 1]} : vector<32x80xf32> to vector<32x8xf32>
    %c0_60 = arith.constant 0 : index
    %c0_61 = arith.constant 0 : index
    %c48 = arith.constant 48 : index
    %96 = vector.load %arg8[%c0_60, %c0_61, %c48] : memref<1x32x64xf32, #tpu.memory_space<vmem>>, vector<1x32x8xf32>
    %97 = vector.shape_cast %96 : vector<1x32x8xf32> to vector<32x8xf32>
    %98 = vector.shape_cast %95 : vector<32x8xf32> to vector<1x32x8xf32>
    tpu.vector_store %arg8[%c0_60, %c0_61, %c48], %98 {strides = array<i32>} : memref<1x32x64xf32, #tpu.memory_space<vmem>>, vector<1x32x8xf32>,
    %99 = vector.extract_strided_slice %70 {offsets = [0, 70], sizes = [32, 8], strides = [1, 1]} : vector<32x80xf32> to vector<32x8xf32>
    %c0_62 = arith.constant 0 : index
    %c0_63 = arith.constant 0 : index
    %c56 = arith.constant 56 : index
    %100 = vector.load %arg8[%c0_62, %c0_63, %c56] : memref<1x32x64xf32, #tpu.memory_space<vmem>>, vector<1x32x8xf32>
    %101 = vector.shape_cast %100 : vector<1x32x8xf32> to vector<32x8xf32>
    %102 = vector.shape_cast %99 : vector<32x8xf32> to vector<1x32x8xf32>
    tpu.vector_store %arg8[%c0_62, %c0_63, %c56], %102 {strides = array<i32>} : memref<1x32x64xf32, #tpu.memory_space<vmem>>, vector<1x32x8xf32>,
    return
  }
  func.func @transform_0(%arg0: i32) -> (i32, i32, i32) {
    %c0_i32 = arith.constant 0 : i32
    %c0_i32_0 = arith.constant 0 : i32
    %c0_i32_1 = arith.constant 0 : i32
    return %arg0, %c0_i32, %c0_i32_0 : i32, i32, i32
  }
  func.func @transform_1(%arg0: i32) -> (i32, i32) {
    %c0_i32 = arith.constant 0 : i32
    %c0_i32_0 = arith.constant 0 : i32
    %c0_i32_1 = arith.constant 0 : i32
    return %c0_i32, %c0_i32_0 : i32, i32
  }
  func.func @transform_2(%arg0: i32) -> (i32, i32) {
    %c0_i32 = arith.constant 0 : i32
    %c0_i32_0 = arith.constant 0 : i32
    %c0_i32_1 = arith.constant 0 : i32
    return %c0_i32, %c0_i32_0 : i32, i32
  }
  func.func @transform_3(%arg0: i32) -> (i32, i32) {
    %c0_i32 = arith.constant 0 : i32
    %c0_i32_0 = arith.constant 0 : i32
    %c0_i32_1 = arith.constant 0 : i32
    return %c0_i32, %c0_i32_0 : i32, i32
  }
  func.func @transform_4(%arg0: i32) -> (i32, i32) {
    %c0_i32 = arith.constant 0 : i32
    %c0_i32_0 = arith.constant 0 : i32
    %c0_i32_1 = arith.constant 0 : i32
    return %c0_i32, %c0_i32_0 : i32, i32
  }
  func.func @transform_5(%arg0: i32) -> (i32, i32) {
    %c0_i32 = arith.constant 0 : i32
    %c0_i32_0 = arith.constant 0 : i32
    %c0_i32_1 = arith.constant 0 : i32
    return %c0_i32, %c0_i32_0 : i32, i32
  }
  func.func @transform_6(%arg0: i32) -> (i32, i32) {
    %c0_i32 = arith.constant 0 : i32
    %c0_i32_0 = arith.constant 0 : i32
    %c0_i32_1 = arith.constant 0 : i32
    return %c0_i32, %c0_i32_0 : i32, i32
  }
  func.func @transform_7(%arg0: i32) -> (i32, i32, i32) {
    %c0_i32 = arith.constant 0 : i32
    %c0_i32_0 = arith.constant 0 : i32
    %c0_i32_1 = arith.constant 0 : i32
    return %arg0, %c0_i32, %c0_i32_0 : i32, i32, i32
  }
}

module attributes {stable_mosaic.version = 11 : i64} {
  func.func @_stage_kernel(%arg0: i32, %arg1: memref<1x16x100xbf16, #tpu.memory_space<vmem>>, %arg2: memref<32x64xbf16, #tpu.memory_space<vmem>>, %arg3: memref<32x1xf32, #tpu.memory_space<vmem>>, %arg4: memref<32x1xf32, #tpu.memory_space<vmem>>, %arg5: memref<32x1xf32, #tpu.memory_space<vmem>>, %arg6: memref<32x32xf32, #tpu.memory_space<vmem>>, %arg7: memref<1x80xf32, #tpu.memory_space<vmem>>, %arg8: memref<1x32x110xbf16, #tpu.memory_space<vmem>>, %arg9: memref<1x32x80xf32, #tpu.memory_space<vmem>>) attributes {dimension_semantics = [#tpu.dimension_semantics<parallel>], iteration_bounds = array<i64: 2>, scalar_prefetch = 0 : i64, scratch_operands = 1 : i64, tpu.core_type = #tpu.core_type<tc>, window_params = [{transform_indices = @transform_0, window_bounds = array<i64: 1, 16, 100>}, {pipeline_mode = #tpu.pipeline_mode<synchronous>, transform_indices = @transform_1, window_bounds = array<i64: 32, 64>}, {pipeline_mode = #tpu.pipeline_mode<synchronous>, transform_indices = @transform_2, window_bounds = array<i64: 32, 1>}, {pipeline_mode = #tpu.pipeline_mode<synchronous>, transform_indices = @transform_3, window_bounds = array<i64: 32, 1>}, {pipeline_mode = #tpu.pipeline_mode<synchronous>, transform_indices = @transform_4, window_bounds = array<i64: 32, 1>}, {pipeline_mode = #tpu.pipeline_mode<synchronous>, transform_indices = @transform_5, window_bounds = array<i64: 32, 32>}, {pipeline_mode = #tpu.pipeline_mode<synchronous>, transform_indices = @transform_6, window_bounds = array<i64: 1, 80>}, {transform_indices = @transform_7, window_bounds = array<i64: 1, 32, 110>}]} {
    %c0 = arith.constant 0 : index
    %c0_0 = arith.constant 0 : index
    %0 = vector.load %arg2[%c0, %c0_0] : memref<32x64xbf16, #tpu.memory_space<vmem>>, vector<32x64xbf16>
    %c0_1 = arith.constant 0 : index
    %c0_2 = arith.constant 0 : index
    %1 = vector.load %arg3[%c0_1, %c0_2] : memref<32x1xf32, #tpu.memory_space<vmem>>, vector<32x1xf32>
    %c0_3 = arith.constant 0 : index
    %c0_4 = arith.constant 0 : index
    %2 = vector.load %arg7[%c0_3, %c0_4] : memref<1x80xf32, #tpu.memory_space<vmem>>, vector<1x80xf32>
    %cst = arith.constant 0.000000e+00 : f32
    %3 = vector.broadcast %cst : f32 to vector<32x1xf32>
    %cst_5 = arith.constant 0.000000e+00 : f32
    %4 = vector.broadcast %cst_5 : f32 to vector<32x1xf32>
    %c0_6 = arith.constant 0 : index
    %c0_7 = arith.constant 0 : index
    %c0_8 = arith.constant 0 : index
    %5 = vector.load %arg1[%c0_6, %c0_7, %c0_8] : memref<1x16x100xbf16, #tpu.memory_space<vmem>>, vector<1x16x80xbf16>
    %6 = vector.shape_cast %5 : vector<1x16x80xbf16> to vector<16x80xbf16>
    %c0_9 = arith.constant 0 : index
    %c0_10 = arith.constant 0 : index
    %c1 = arith.constant 1 : index
    %7 = vector.load %arg1[%c0_9, %c0_10, %c1] : memref<1x16x100xbf16, #tpu.memory_space<vmem>>, vector<1x16x80xbf16>
    %8 = vector.shape_cast %7 : vector<1x16x80xbf16> to vector<16x80xbf16>
    %c0_11 = arith.constant 0 : index
    %c0_12 = arith.constant 0 : index
    %c10 = arith.constant 10 : index
    %9 = vector.load %arg1[%c0_11, %c0_12, %c10] : memref<1x16x100xbf16, #tpu.memory_space<vmem>>, vector<1x16x80xbf16>
    %10 = vector.shape_cast %9 : vector<1x16x80xbf16> to vector<16x80xbf16>
    %c0_13 = arith.constant 0 : index
    %c0_14 = arith.constant 0 : index
    %c11 = arith.constant 11 : index
    %11 = vector.load %arg1[%c0_13, %c0_14, %c11] : memref<1x16x100xbf16, #tpu.memory_space<vmem>>, vector<1x16x80xbf16>
    %12 = vector.shape_cast %11 : vector<1x16x80xbf16> to vector<16x80xbf16>
    %13 = tpu.concatenate %6, %8, %10, %12 in 0 : vector<16x80xbf16>, vector<16x80xbf16>, vector<16x80xbf16>, vector<16x80xbf16> -> vector<64x80xbf16>
    %cst_15 = arith.constant dense<0.000000e+00> : vector<32x80xf32>
    %14 = tpu.matmul %0, %13, %cst_15 {dimension_numbers = #tpu.dot_dimension_numbers<[1], [0], [0], [1], [0, 0, 1, 1], [], []>} : vector<32x64xbf16>, vector<64x80xbf16>, vector<32x80xf32> -> vector<32x80xf32>
    %15 = vector.broadcast %1 : vector<32x1xf32> to vector<32x80xf32>
    %16 = arith.addf %14, %15 : vector<32x80xf32>
    %c0_16 = arith.constant 0 : index
    %c0_17 = arith.constant 0 : index
    %c0_18 = arith.constant 0 : index
    %17 = vector.load %arg9[%c0_16, %c0_17, %c0_18] : memref<1x32x80xf32, #tpu.memory_space<vmem>>, vector<1x32x80xf32>
    %18 = vector.shape_cast %17 : vector<1x32x80xf32> to vector<32x80xf32>
    %19 = vector.shape_cast %16 : vector<32x80xf32> to vector<1x32x80xf32>
    tpu.vector_store %arg9[%c0_16, %c0_17, %c0_18], %19 {strides = array<i32>} : memref<1x32x80xf32, #tpu.memory_space<vmem>>, vector<1x32x80xf32>,
    %20 = vector.broadcast %2 : vector<1x80xf32> to vector<32x80xf32>
    %21 = arith.mulf %16, %20 : vector<32x80xf32>
    %cst_19 = arith.constant dense<0.000000e+00> : vector<32xf32>
    %22 = vector.multi_reduction <add>, %21, %cst_19 [1] : vector<32x80xf32> to vector<32xf32>
    %23 = vector.shape_cast %22 : vector<32xf32> to vector<32x1xf32>
    %24 = arith.addf %3, %23 : vector<32x1xf32>
    %25 = arith.mulf %21, %16 : vector<32x80xf32>
    %cst_20 = arith.constant dense<0.000000e+00> : vector<32xf32>
    %26 = vector.multi_reduction <add>, %25, %cst_20 [1] : vector<32x80xf32> to vector<32xf32>
    %27 = vector.shape_cast %26 : vector<32xf32> to vector<32x1xf32>
    %28 = arith.addf %4, %27 : vector<32x1xf32>
    %29 = tpu.concatenate %24, %28 in 1 : vector<32x1xf32>, vector<32x1xf32> -> vector<32x2xf32>
    %c0_21 = arith.constant 0 : index
    %c0_22 = arith.constant 0 : index
    %30 = vector.load %arg6[%c0_21, %c0_22] : memref<32x32xf32, #tpu.memory_space<vmem>>, vector<32x32xf32>
    %cst_23 = arith.constant dense<0.000000e+00> : vector<32x2xf32>
    %31 = tpu.matmul %30, %29, %cst_23 {dimension_numbers = #tpu.dot_dimension_numbers<[1], [0], [0], [1], [0, 0, 1, 1], [], []>} : vector<32x32xf32>, vector<32x2xf32>, vector<32x2xf32> -> vector<32x2xf32>
    %32 = vector.extract_strided_slice %31 {offsets = [0, 0], sizes = [32, 1], strides = [1, 1]} : vector<32x2xf32> to vector<32x1xf32>
    %cst_24 = arith.constant 7.812500e-03 : f32
    %33 = vector.broadcast %cst_24 : f32 to vector<32x1xf32>
    %34 = arith.mulf %32, %33 : vector<32x1xf32>
    %35 = vector.extract_strided_slice %31 {offsets = [0, 1], sizes = [32, 1], strides = [1, 1]} : vector<32x2xf32> to vector<32x1xf32>
    %cst_25 = arith.constant 7.812500e-03 : f32
    %36 = vector.broadcast %cst_25 : f32 to vector<32x1xf32>
    %37 = arith.mulf %35, %36 : vector<32x1xf32>
    %38 = arith.mulf %34, %34 : vector<32x1xf32>
    %39 = arith.subf %37, %38 : vector<32x1xf32>
    %cst_26 = arith.constant 0.000000e+00 : f32
    %40 = vector.broadcast %cst_26 : f32 to vector<32x1xf32>
    %41 = arith.maximumf %39, %40 : vector<32x1xf32>
    %c0_27 = arith.constant 0 : index
    %c0_28 = arith.constant 0 : index
    %42 = vector.load %arg4[%c0_27, %c0_28] : memref<32x1xf32, #tpu.memory_space<vmem>>, vector<32x1xf32>
    %cst_29 = arith.constant 9.99999974E-6 : f32
    %43 = vector.broadcast %cst_29 : f32 to vector<32x1xf32>
    %44 = arith.addf %41, %43 : vector<32x1xf32>
    %45 = math.rsqrt %44 : vector<32x1xf32>
    %46 = arith.mulf %42, %45 : vector<32x1xf32>
    %c0_30 = arith.constant 0 : index
    %c0_31 = arith.constant 0 : index
    %47 = vector.load %arg5[%c0_30, %c0_31] : memref<32x1xf32, #tpu.memory_space<vmem>>, vector<32x1xf32>
    %48 = arith.mulf %34, %46 : vector<32x1xf32>
    %49 = arith.subf %47, %48 : vector<32x1xf32>
    %cst_32 = arith.constant 0.000000e+00 : bf16
    %50 = vector.broadcast %cst_32 : bf16 to vector<32x11xbf16>
    %c0_33 = arith.constant 0 : index
    %c0_34 = arith.constant 0 : index
    %c0_35 = arith.constant 0 : index
    %51 = vector.load %arg8[%c0_33, %c0_34, %c0_35] : memref<1x32x110xbf16, #tpu.memory_space<vmem>>, vector<1x32x11xbf16>
    %52 = vector.shape_cast %51 : vector<1x32x11xbf16> to vector<32x11xbf16>
    %53 = vector.shape_cast %50 : vector<32x11xbf16> to vector<1x32x11xbf16>
    tpu.vector_store %arg8[%c0_33, %c0_34, %c0_35], %53 {strides = array<i32>} : memref<1x32x110xbf16, #tpu.memory_space<vmem>>, vector<1x32x11xbf16>,
    %cst_36 = arith.constant 0.000000e+00 : bf16
    %54 = vector.broadcast %cst_36 : bf16 to vector<32x19xbf16>
    %c0_37 = arith.constant 0 : index
    %c0_38 = arith.constant 0 : index
    %c91 = arith.constant 91 : index
    %55 = vector.load %arg8[%c0_37, %c0_38, %c91] : memref<1x32x110xbf16, #tpu.memory_space<vmem>>, vector<1x32x19xbf16>
    %56 = vector.shape_cast %55 : vector<1x32x19xbf16> to vector<32x19xbf16>
    %57 = vector.shape_cast %54 : vector<32x19xbf16> to vector<1x32x19xbf16>
    tpu.vector_store %arg8[%c0_37, %c0_38, %c91], %57 {strides = array<i32>} : memref<1x32x110xbf16, #tpu.memory_space<vmem>>, vector<1x32x19xbf16>,
    %c0_39 = arith.constant 0 : index
    %c0_40 = arith.constant 0 : index
    %c0_41 = arith.constant 0 : index
    %58 = vector.load %arg9[%c0_39, %c0_40, %c0_41] : memref<1x32x80xf32, #tpu.memory_space<vmem>>, vector<1x32x80xf32>
    %59 = vector.shape_cast %58 : vector<1x32x80xf32> to vector<32x80xf32>
    %60 = vector.broadcast %46 : vector<32x1xf32> to vector<32x80xf32>
    %61 = arith.mulf %59, %60 : vector<32x80xf32>
    %62 = vector.broadcast %49 : vector<32x1xf32> to vector<32x80xf32>
    %63 = arith.addf %61, %62 : vector<32x80xf32>
    %cst_42 = arith.constant 0.000000e+00 : f32
    %64 = vector.broadcast %cst_42 : f32 to vector<32x80xf32>
    %65 = arith.cmpf ogt, %63, %64 : vector<32x80xf32>
    %cst_43 = arith.constant 2.000000e-01 : f32
    %66 = vector.broadcast %cst_43 : f32 to vector<32x80xf32>
    %67 = arith.mulf %66, %63 : vector<32x80xf32>
    %68 = arith.select %65, %63, %67 : vector<32x80xi1>, vector<32x80xf32>
    %69 = vector.broadcast %2 : vector<1x80xf32> to vector<32x80xf32>
    %70 = arith.mulf %68, %69 : vector<32x80xf32>
    %71 = arith.truncf %70 : vector<32x80xf32> to vector<32x80xbf16>
    %c0_44 = arith.constant 0 : index
    %c0_45 = arith.constant 0 : index
    %c11_46 = arith.constant 11 : index
    %72 = vector.load %arg8[%c0_44, %c0_45, %c11_46] : memref<1x32x110xbf16, #tpu.memory_space<vmem>>, vector<1x32x80xbf16>
    %73 = vector.shape_cast %72 : vector<1x32x80xbf16> to vector<32x80xbf16>
    %74 = vector.shape_cast %71 : vector<32x80xbf16> to vector<1x32x80xbf16>
    tpu.vector_store %arg8[%c0_44, %c0_45, %c11_46], %74 {strides = array<i32>} : memref<1x32x110xbf16, #tpu.memory_space<vmem>>, vector<1x32x80xbf16>,
    return
  }
  func.func @transform_0(%arg0: i32) -> (i32, i32, i32) {
    %c0_i32 = arith.constant 0 : i32
    %c0_i32_0 = arith.constant 0 : i32
    %c0_i32_1 = arith.constant 0 : i32
    return %arg0, %c0_i32, %c0_i32_0 : i32, i32, i32
  }
  func.func @transform_1(%arg0: i32) -> (i32, i32) {
    %c0_i32 = arith.constant 0 : i32
    %c0_i32_0 = arith.constant 0 : i32
    %c0_i32_1 = arith.constant 0 : i32
    return %c0_i32, %c0_i32_0 : i32, i32
  }
  func.func @transform_2(%arg0: i32) -> (i32, i32) {
    %c0_i32 = arith.constant 0 : i32
    %c0_i32_0 = arith.constant 0 : i32
    %c0_i32_1 = arith.constant 0 : i32
    return %c0_i32, %c0_i32_0 : i32, i32
  }
  func.func @transform_3(%arg0: i32) -> (i32, i32) {
    %c0_i32 = arith.constant 0 : i32
    %c0_i32_0 = arith.constant 0 : i32
    %c0_i32_1 = arith.constant 0 : i32
    return %c0_i32, %c0_i32_0 : i32, i32
  }
  func.func @transform_4(%arg0: i32) -> (i32, i32) {
    %c0_i32 = arith.constant 0 : i32
    %c0_i32_0 = arith.constant 0 : i32
    %c0_i32_1 = arith.constant 0 : i32
    return %c0_i32, %c0_i32_0 : i32, i32
  }
  func.func @transform_5(%arg0: i32) -> (i32, i32) {
    %c0_i32 = arith.constant 0 : i32
    %c0_i32_0 = arith.constant 0 : i32
    %c0_i32_1 = arith.constant 0 : i32
    return %c0_i32, %c0_i32_0 : i32, i32
  }
  func.func @transform_6(%arg0: i32) -> (i32, i32) {
    %c0_i32 = arith.constant 0 : i32
    %c0_i32_0 = arith.constant 0 : i32
    %c0_i32_1 = arith.constant 0 : i32
    return %c0_i32, %c0_i32_0 : i32, i32
  }
  func.func @transform_7(%arg0: i32) -> (i32, i32, i32) {
    %c0_i32 = arith.constant 0 : i32
    %c0_i32_0 = arith.constant 0 : i32
    %c0_i32_1 = arith.constant 0 : i32
    return %arg0, %c0_i32, %c0_i32_0 : i32, i32, i32
  }
}

</mosaic_0001>

<llo_original>
// kernel: down_block_forward.3
$region0: #{down_block_forward.3}
  #allocation0 [shape = 'u32[]', space=smem, size = 0x4, offset = 0x4, fixed_abs, tag = 'smem constant byte address 0x4 - core index']
  #allocation1 [shape = 'u32[144,128]{1,0:T(1,128)}', space=vmem, size = 0x12000, scoped, tag = 'internal scratch']
  #allocation2 [shape = 'f32[1,32,80]{2,1,0:T(8,128)}', space=vmem, size = 0x4000, scoped, tag = 'scratch operand']
  %s0 = inlined_call_operand.hbm [shape: bf16[2,32,110], index: 0, kind: input, shape index: {}]
  %s1 = inlined_call_operand.hbm [shape: bf16[32,288], index: 1, kind: input, shape index: {}]
  %s2 = inlined_call_operand.hbm [shape: f32[32,1], index: 2, kind: input, shape index: {}]
  %s3 = inlined_call_operand.hbm [shape: f32[32,1], index: 3, kind: input, shape index: {}]
  %s4 = inlined_call_operand.hbm [shape: f32[32,1], index: 4, kind: input, shape index: {}]
  %s5 = inlined_call_operand.hbm [shape: f32[32,32], index: 5, kind: input, shape index: {}]
  %s6 = inlined_call_operand.hbm [shape: f32[1,80], index: 6, kind: input, shape index: {}]
  %s7 = inlined_call_operand.hbm [shape: f32[2,32,64], index: 7, kind: output, shape index: {}]
  %s8 = sld [smem:[#allocation0]]
  $region89: #{down_block_forward.3} parent=0
    _
  %s10 = ssub.s32 1, %s8
  %s11 = scalar_select 0, %s10, %s8
  $region1: #{down_block_forward.3} parent=0
    #allocation3 [shape = 'u8[16384]{0}', space=vmem, size = 0x4000, scoped, tag = 'input window, operand 0']
    #allocation4 [shape = 's32[2]{0}', space=sflag, size = 0x8, scoped, tag = 'scoped memory for down_block_forward.3']
    #allocation5 [shape = 's32[2]{0}', space=sflag, size = 0x8, scoped, tag = 'scoped memory for down_block_forward.3']
    #allocation6 [shape = 'u8[24576]{0}', space=vmem, size = 0x6000, scoped, tag = 'input window, operand 1, single buffered']
    #allocation7 [shape = 's32[1]{0}', space=sflag, size = 0x4, scoped, tag = 'scoped memory for down_block_forward.3']
    #allocation8 [shape = 'u8[16384]{0}', space=vmem, size = 0x4000, scoped, tag = 'input window, operand 2, single buffered']
    #allocation9 [shape = 'u8[16384]{0}', space=vmem, size = 0x4000, scoped, tag = 'input window, operand 3, single buffered']
    #allocation10 [shape = 's32[1]{0}', space=sflag, size = 0x4, scoped, tag = 'scoped memory for down_block_forward.3']
    #allocation11 [shape = 'u8[16384]{0}', space=vmem, size = 0x4000, scoped, tag = 'input window, operand 4, single buffered']
    #allocation12 [shape = 'u8[16384]{0}', space=vmem, size = 0x4000, scoped, tag = 'input window, operand 5, single buffered']
    #allocation13 [shape = 's32[1]{0}', space=sflag, size = 0x4, scoped, tag = 'scoped memory for down_block_forward.3']
    #allocation14 [shape = 'u8[512]{0}', space=vmem, size = 0x400, scoped, tag = 'input window, operand 6, single buffered']
    #allocation15 [shape = 'u8[32768]{0}', space=vmem, size = 0x8000, scoped, tag = 'output window, operand 0']
    %12 = vsyncpa [#allocation4], 0
    %s13 = scalar_lea.sflag [#allocation4], 1
    %14 = vsyncpa %s13, 0
    %15 = vsyncpa [#allocation7], 0
    %16 = vsyncpa [#allocation10], 0
    %17 = vsyncpa [#allocation13], 0
    %18 = vsyncpa [#allocation5], 0
    %s19 = scalar_lea.sflag [#allocation5], 1
    %20 = vsyncpa %s19, 0
    loop: start=0, step=1, limit=4
    $region2: #{down_block_forward.3} parent=1 // loop_pre_header
      _
    $region3: #{down_block_forward.3} parent=1 // loop_header
      %s22 = sphi 0, %s26
      %p23 = scmp.ge.s32.totalorder %s22, 4
      %s32 = sphi 0, %s34
      %s35 = sphi 0, %s32
      %s36 = sphi 0, %s35
      %s52 = sphi 0, %s36
      %s56 = sphi 0, %s56
      %s58 = sphi 0, %s56
      %s59 = sphi 0, %s58
      %s73 = sphi 0, %s59
      %s77 = sphi 0, %s77
      %s79 = sphi 0, %s77
      %s80 = sphi 0, %s79
      %s94 = sphi 0, %s80
      %s98 = sphi 0, %s98
      %s100 = sphi 0, %s98
      %s101 = sphi 0, %s100
      %s115 = sphi 0, %s101
      %s119 = sphi 0, %s119
      %s121 = sphi 0, %s119
      %s122 = sphi 0, %s121
      %s136 = sphi 0, %s122
      %s140 = sphi 0, %s140
      %s142 = sphi 0, %s140
      %s143 = sphi 0, %s142
      %s157 = sphi 0, %s143
      %s161 = sphi 0, %s161
      %s163 = sphi 0, %s161
      %s164 = sphi 0, %s163
      %s178 = sphi 0, %s164
      %s184 = sphi 0, %s186
      %s187 = sphi 0, %s184
      %s188 = sphi 0, %s187
      %s204 = sphi 0, %s188
    $region4: #{down_block_forward.3} parent=1 // loop_header_branch
      %25 = sbr.rel (%p23) target = $region8
    $region5: #{down_block_forward.3} parent=1 // loop_body
      %s27 = ssub.s32 %s22, 1
      %s28 = ssub.s32 %s22, 2
      %s29 = sadd.s32 %s22, 1
      %s30 = ssub.s32 %s22, %s29
      %p31 = scmp.eq.s32.totalorder %s30, 0
      %s33 = sadd.s32 %s32, 1
      %s34 = scalar_select %p31, %s32, %s33
      %p37 = pneg %p31
      %p38 = scmp.eq.s32.totalorder %s22, 1
      %p39 = por %p37, %p38
      %p40 = scmp.ne.s32.totalorder %s32, %s35
      %p41 = scmp.eq.s32.totalorder %s22, 0
      %p42 = por %p40, %p41
      %p43 = scmp.ne.s32.totalorder %s32, %s35
      %p44 = scmp.eq.s32.totalorder %s27, 1
      %p45 = por %p43, %p44
      %p46 = scmp.ne.s32.totalorder %s35, %s36
      %p47 = scmp.eq.s32.totalorder %s27, 0
      %p48 = por %p46, %p47
      %p49 = scmp.ne.s32.totalorder %s35, %s36
      %p50 = scmp.eq.s32.totalorder %s28, 1
      %p51 = por %p49, %p50
      %p53 = scmp.ne.s32.totalorder %s36, %s52
      %p54 = scmp.eq.s32.totalorder %s28, 0
      %p55 = por %p53, %p54
      %s57 = sadd.s32 %s56, 1
      %p60 = scmp.eq.s32.totalorder %s22, 1
      %p61 = scmp.ne.s32.totalorder %s56, %s58
      %p62 = scmp.eq.s32.totalorder %s22, 0
      %p63 = por %p61, %p62
      %p64 = scmp.ne.s32.totalorder %s56, %s58
      %p65 = scmp.eq.s32.totalorder %s27, 1
      %p66 = por %p64, %p65
      %p67 = scmp.ne.s32.totalorder %s58, %s59
      %p68 = scmp.eq.s32.totalorder %s27, 0
      %p69 = por %p67, %p68
      %p70 = scmp.ne.s32.totalorder %s58, %s59
      %p71 = scmp.eq.s32.totalorder %s28, 1
      %p72 = por %p70, %p71
      %p74 = scmp.ne.s32.totalorder %s59, %s73
      %p75 = scmp.eq.s32.totalorder %s28, 0
      %p76 = por %p74, %p75
      %s78 = sadd.s32 %s77, 1
      %p81 = scmp.eq.s32.totalorder %s22, 1
      %p82 = scmp.ne.s32.totalorder %s77, %s79
      %p83 = scmp.eq.s32.totalorder %s22, 0
      %p84 = por %p82, %p83
      %p85 = scmp.ne.s32.totalorder %s77, %s79
      %p86 = scmp.eq.s32.totalorder %s27, 1
      %p87 = por %p85, %p86
      %p88 = scmp.ne.s32.totalorder %s79, %s80
      %p89 = scmp.eq.s32.totalorder %s27, 0
      %p90 = por %p88, %p89
      %p91 = scmp.ne.s32.totalorder %s79, %s80
      %p92 = scmp.eq.s32.totalorder %s28, 1
      %p93 = por %p91, %p92
      %p95 = scmp.ne.s32.totalorder %s80, %s94
      %p96 = scmp.eq.s32.totalorder %s28, 0
      %p97 = por %p95, %p96
      %s99 = sadd.s32 %s98, 1
      %p102 = scmp.eq.s32.totalorder %s22, 1
      %p103 = scmp.ne.s32.totalorder %s98, %s100
      %p104 = scmp.eq.s32.totalorder %s22, 0
      %p105 = por %p103, %p104
      %p106 = scmp.ne.s32.totalorder %s98, %s100
      %p107 = scmp.eq.s32.totalorder %s27, 1
      %p108 = por %p106, %p107
      %p109 = scmp.ne.s32.totalorder %s100, %s101
      %p110 = scmp.eq.s32.totalorder %s27, 0
      %p111 = por %p109, %p110
      %p112 = scmp.ne.s32.totalorder %s100, %s101
      %p113 = scmp.eq.s32.totalorder %s28, 1
      %p114 = por %p112, %p113
      %p116 = scmp.ne.s32.totalorder %s101, %s115
      %p117 = scmp.eq.s32.totalorder %s28, 0
      %p118 = por %p116, %p117
      %s120 = sadd.s32 %s119, 1
      %p123 = scmp.eq.s32.totalorder %s22, 1
      %p124 = scmp.ne.s32.totalorder %s119, %s121
      %p125 = scmp.eq.s32.totalorder %s22, 0
      %p126 = por %p124, %p125
      %p127 = scmp.ne.s32.totalorder %s119, %s121
      %p128 = scmp.eq.s32.totalorder %s27, 1
      %p129 = por %p127, %p128
      %p130 = scmp.ne.s32.totalorder %s121, %s122
      %p131 = scmp.eq.s32.totalorder %s27, 0
      %p132 = por %p130, %p131
      %p133 = scmp.ne.s32.totalorder %s121, %s122
      %p134 = scmp.eq.s32.totalorder %s28, 1
      %p135 = por %p133, %p134
      %p137 = scmp.ne.s32.totalorder %s122, %s136
      %p138 = scmp.eq.s32.totalorder %s28, 0
      %p139 = por %p137, %p138
      %s141 = sadd.s32 %s140, 1
      %p144 = scmp.eq.s32.totalorder %s22, 1
      %p145 = scmp.ne.s32.totalorder %s140, %s142
      %p146 = scmp.eq.s32.totalorder %s22, 0
      %p147 = por %p145, %p146
      %p148 = scmp.ne.s32.totalorder %s140, %s142
      %p149 = scmp.eq.s32.totalorder %s27, 1
      %p150 = por %p148, %p149
      %p151 = scmp.ne.s32.totalorder %s142, %s143
      %p152 = scmp.eq.s32.totalorder %s27, 0
      %p153 = por %p151, %p152
      %p154 = scmp.ne.s32.totalorder %s142, %s143
      %p155 = scmp.eq.s32.totalorder %s28, 1
      %p156 = por %p154, %p155
      %p158 = scmp.ne.s32.totalorder %s143, %s157
      %p159 = scmp.eq.s32.totalorder %s28, 0
      %p160 = por %p158, %p159
      %s162 = sadd.s32 %s161, 1
      %p165 = scmp.eq.s32.totalorder %s22, 1
      %p166 = scmp.ne.s32.totalorder %s161, %s163
      %p167 = scmp.eq.s32.totalorder %s22, 0
      %p168 = por %p166, %p167
      %p169 = scmp.ne.s32.totalorder %s161, %s163
      %p170 = scmp.eq.s32.totalorder %s27, 1
      %p171 = por %p169, %p170
      %p172 = scmp.ne.s32.totalorder %s163, %s164
      %p173 = scmp.eq.s32.totalorder %s27, 0
      %p174 = por %p172, %p173
      %p175 = scmp.ne.s32.totalorder %s163, %s164
      %p176 = scmp.eq.s32.totalorder %s28, 1
      %p177 = por %p175, %p176
      %p179 = scmp.ne.s32.totalorder %s164, %s178
      %p180 = scmp.eq.s32.totalorder %s28, 0
      %p181 = por %p179, %p180
      %s182 = ssub.s32 %s22, %s29
      %p183 = scmp.eq.s32.totalorder %s182, 0
      %s185 = sadd.s32 %s184, 1
      %s186 = scalar_select %p183, %s184, %s185
      %p189 = pneg %p183
      %p190 = scmp.eq.s32.totalorder %s22, 1
      %p191 = por %p189, %p190
      %p192 = scmp.ne.s32.totalorder %s184, %s187
      %p193 = scmp.eq.s32.totalorder %s22, 0
      %p194 = por %p192, %p193
      %p195 = scmp.ne.s32.totalorder %s184, %s187
      %p196 = scmp.eq.s32.totalorder %s27, 1
      %p197 = por %p195, %p196
      %p198 = scmp.ne.s32.totalorder %s187, %s188
      %p199 = scmp.eq.s32.totalorder %s27, 0
      %p200 = por %p198, %p199
      %p201 = scmp.ne.s32.totalorder %s187, %s188
      %p202 = scmp.eq.s32.totalorder %s28, 1
      %p203 = por %p201, %p202
      %p205 = scmp.ne.s32.totalorder %s188, %s204
      %p206 = scmp.eq.s32.totalorder %s28, 0
      %p207 = por %p205, %p206
      %p208 = scmp.le.s32.totalorder 1, %s22
      %p209 = scmp.lt.s32.totalorder %s22, 3
      %p210 = pnand %p208, %p209
      %p211 = pneg %p210
      // Predicated region
      $region9: #{down_block_forward.3} parent=5 // pred_check
        _
      $region10: #{down_block_forward.3} parent=5 // pred_check_branch
        %213 = sbr.rel (%p210) target = $region12
      $region11: #{down_block_forward.3} parent=5 // pred_region
        %s214 = ssub.s32 %s22, 1
        // Predicated region
        $region13: #{down_block_forward.3} parent=11 // pred_check
          %p215 = pneg %p69
        $region14: #{down_block_forward.3} parent=11 // pred_check_branch
          %217 = sbr.rel (%p215) target = $region16
        $region15: #{down_block_forward.3} parent=11 // pred_region
          %s219 = ssub.s32 768, 768
          %220 = vsyncadd [#allocation7], %s219
          %s221 = sshll.u32 [#allocation6], 4
          %s222 = int_to_ptr.vmem [resolvable:$true] %s221
          %227 = dma.hbm_to_vmem [thread:$0]  %s1, 768, %s222, [#allocation7], 192, 192, 12
        $region16: #{down_block_forward.3} parent=11 // pred_fallthru
          _
        // Predicated region
        $region17: #{down_block_forward.3} parent=11 // pred_check
          %p228 = pneg %p90
        $region18: #{down_block_forward.3} parent=11 // pred_check_branch
          %230 = sbr.rel (%p228) target = $region20
        $region19: #{down_block_forward.3} parent=11 // pred_region
          %s232 = ssub.s32 512, 512
          %233 = vsyncadd [#allocation7], %s232
          %s234 = sshll.u32 [#allocation8], 4
          %s235 = int_to_ptr.vmem [resolvable:$true] %s234
          %240 = dma.hbm_to_vmem [thread:$0]  %s2, 512, %s235, [#allocation7], 128, 128, 8
        $region20: #{down_block_forward.3} parent=11 // pred_fallthru
          _
        // Predicated region
        $region21: #{down_block_forward.3} parent=11 // pred_check
          %p241 = pneg %p111
        $region22: #{down_block_forward.3} parent=11 // pred_check_branch
          %243 = sbr.rel (%p241) target = $region24
        $region23: #{down_block_forward.3} parent=11 // pred_region
          %s245 = ssub.s32 512, 512
          %246 = vsyncadd [#allocation10], %s245
          %s247 = sshll.u32 [#allocation9], 4
          %s248 = int_to_ptr.vmem [resolvable:$true] %s247
          %253 = dma.hbm_to_vmem [thread:$0]  %s3, 512, %s248, [#allocation10], 128, 128, 8
        $region24: #{down_block_forward.3} parent=11 // pred_fallthru
          _
        // Predicated region
        $region25: #{down_block_forward.3} parent=11 // pred_check
          %p254 = pneg %p132
        $region26: #{down_block_forward.3} parent=11 // pred_check_branch
          %256 = sbr.rel (%p254) target = $region28
        $region27: #{down_block_forward.3} parent=11 // pred_region
          %s258 = ssub.s32 512, 512
          %259 = vsyncadd [#allocation10], %s258
          %s260 = sshll.u32 [#allocation11], 4
          %s261 = int_to_ptr.vmem [resolvable:$true] %s260
          %266 = dma.hbm_to_vmem [thread:$0]  %s4, 512, %s261, [#allocation10], 128, 128, 8
        $region28: #{down_block_forward.3} parent=11 // pred_fallthru
          _
        // Predicated region
        $region29: #{down_block_forward.3} parent=11 // pred_check
          %p267 = pneg %p153
        $region30: #{down_block_forward.3} parent=11 // pred_check_branch
          %269 = sbr.rel (%p267) target = $region32
        $region31: #{down_block_forward.3} parent=11 // pred_region
          %s271 = ssub.s32 512, 512
          %272 = vsyncadd [#allocation13], %s271
          %s273 = sshll.u32 [#allocation12], 4
          %s274 = int_to_ptr.vmem [resolvable:$true] %s273
          %279 = dma.hbm_to_vmem [thread:$0]  %s5, 512, %s274, [#allocation13], 128, 128, 8
        $region32: #{down_block_forward.3} parent=11 // pred_fallthru
          _
        // Predicated region
        $region33: #{down_block_forward.3} parent=11 // pred_check
          %p280 = pneg %p174
        $region34: #{down_block_forward.3} parent=11 // pred_check_branch
          %282 = sbr.rel (%p280) target = $region36
        $region35: #{down_block_forward.3} parent=11 // pred_region
          %s284 = ssub.s32 16, 16
          %285 = vsyncadd [#allocation13], %s284
          %s287 = sshll.u32 [#allocation14], 4
          %s288 = int_to_ptr.vmem [resolvable:$true] %s287
          %290 = dma.hbm_to_vmem [thread:$0]  %s6, 16, %s288, [#allocation13]
        $region36: #{down_block_forward.3} parent=11 // pred_fallthru
          _
      $region12: #{down_block_forward.3} parent=5 // pred_fallthru
        _
      %p291 = scmp.lt.s32.totalorder %s22, 2
      // Predicated region
      $region37: #{down_block_forward.3} parent=5 // pred_check
        %p292 = pneg %p291
      $region38: #{down_block_forward.3} parent=5 // pred_check_branch
        %294 = sbr.rel (%p292) target = $region40
      $region39: #{down_block_forward.3} parent=5 // pred_region
        // Predicated region
        $region41: #{down_block_forward.3} parent=39 // pred_check
          %p295 = pneg %p42
        $region42: #{down_block_forward.3} parent=39 // pred_check_branch
          %297 = sbr.rel (%p295) target = $region44
        $region43: #{down_block_forward.3} parent=39 // pred_region
          %s298 = sand.u32 %s32, 1
          %s299 = scalar_lea.sflag [#allocation4], %s298
          %s300 = sand.u32 %s32, 1
          %s301 = smul.addr %s300, 16
          %s302 = scalar_lea.vmem [#allocation3], %s301
          %s304 = ssub.s32 256, 256
          %305 = vsyncadd %s299, %s304
          %s306 = smul.addr %s22, 4
          %s307 = smul.addr %s306, 64
          %s308 = scalar_lea.hbm %s0, %s307
          %s309 = sshll.u32 %s302, 4
          %s310 = int_to_ptr.vmem [resolvable:$true] %s309
          %315 = dma.hbm_to_vmem [thread:$0]  %s308, 256, %s310, %s299, 64, 64, 4
        $region44: #{down_block_forward.3} parent=39 // pred_fallthru
          _
      $region40: #{down_block_forward.3} parent=5 // pred_fallthru
        _
      %p316 = scmp.le.s32.totalorder 1, %s22
      %p317 = scmp.lt.s32.totalorder %s22, 3
      %p318 = pnand %p316, %p317
      %p319 = pneg %p318
      // Predicated region
      $region45: #{down_block_forward.3} parent=5 // pred_check
        _
      $region46: #{down_block_forward.3} parent=5 // pred_check_branch
        %321 = sbr.rel (%p318) target = $region48
      $region47: #{down_block_forward.3} parent=5 // pred_region
        %s322 = ssub.s32 %s22, 1
        %s323 = sand.u32 %s35, 1
        %s324 = scalar_lea.sflag [#allocation4], %s323
        %s325 = sand.u32 %s35, 1
        %s326 = smul.addr %s325, 16
        %s327 = scalar_lea.vmem [#allocation3], %s326
        // Predicated region
        $region49: #{down_block_forward.3} parent=47 // pred_check
          %p328 = pneg %p48
        $region50: #{down_block_forward.3} parent=47 // pred_check_branch
          %330 = sbr.rel (%p328) target = $region52
        $region51: #{down_block_forward.3} parent=47 // pred_region
          %331 = dma.done %s324, 256
        $region52: #{down_block_forward.3} parent=47 // pred_fallthru
          _
        // Predicated region
        $region53: #{down_block_forward.3} parent=47 // pred_check
          %p332 = pneg %p69
        $region54: #{down_block_forward.3} parent=47 // pred_check_branch
          %334 = sbr.rel (%p332) target = $region56
        $region55: #{down_block_forward.3} parent=47 // pred_region
          %335 = dma.done [#allocation7], 768
        $region56: #{down_block_forward.3} parent=47 // pred_fallthru
          _
        // Predicated region
        $region57: #{down_block_forward.3} parent=47 // pred_check
          %p336 = pneg %p90
        $region58: #{down_block_forward.3} parent=47 // pred_check_branch
          %338 = sbr.rel (%p336) target = $region60
        $region59: #{down_block_forward.3} parent=47 // pred_region
          %339 = dma.done [#allocation7], 512
        $region60: #{down_block_forward.3} parent=47 // pred_fallthru
          _
        // Predicated region
        $region61: #{down_block_forward.3} parent=47 // pred_check
          %p340 = pneg %p111
        $region62: #{down_block_forward.3} parent=47 // pred_check_branch
          %342 = sbr.rel (%p340) target = $region64
        $region63: #{down_block_forward.3} parent=47 // pred_region
          %343 = dma.done [#allocation10], 512
        $region64: #{down_block_forward.3} parent=47 // pred_fallthru
          _
        // Predicated region
        $region65: #{down_block_forward.3} parent=47 // pred_check
          %p344 = pneg %p132
        $region66: #{down_block_forward.3} parent=47 // pred_check_branch
          %346 = sbr.rel (%p344) target = $region68
        $region67: #{down_block_forward.3} parent=47 // pred_region
          %347 = dma.done [#allocation10], 512
        $region68: #{down_block_forward.3} parent=47 // pred_fallthru
          _
        // Predicated region
        $region69: #{down_block_forward.3} parent=47 // pred_check
          %p348 = pneg %p153
        $region70: #{down_block_forward.3} parent=47 // pred_check_branch
          %350 = sbr.rel (%p348) target = $region72
        $region71: #{down_block_forward.3} parent=47 // pred_region
          %351 = dma.done [#allocation13], 512
        $region72: #{down_block_forward.3} parent=47 // pred_fallthru
          _
        // Predicated region
        $region73: #{down_block_forward.3} parent=47 // pred_check
          %p352 = pneg %p174
        $region74: #{down_block_forward.3} parent=47 // pred_check_branch
          %354 = sbr.rel (%p352) target = $region76
        $region75: #{down_block_forward.3} parent=47 // pred_region
          %355 = dma.done [#allocation13], 16
        $region76: #{down_block_forward.3} parent=47 // pred_fallthru
          _
        %s356 = sand.u32 %s35, 1
        %s357 = scalar_lea.sflag [#allocation4], %s356
        %s358 = sand.u32 %s35, 1
        %s359 = smul.addr %s358, 16
        %s360 = scalar_lea.vmem [#allocation3], %s359
        %p361 = pneg %p48
        %p362 = pneg %p45
        %p363 = pneg %p69
        %p364 = pneg %p66
        %p365 = pneg %p90
        %p366 = pneg %p87
        %p367 = pneg %p111
        %p368 = pneg %p108
        %p369 = pneg %p132
        %p370 = pneg %p129
        %p371 = pneg %p153
        %p372 = pneg %p150
        %p373 = pneg %p174
        %p374 = pneg %p171
        %p375 = pneg %p200
        %p376 = pneg %p197
        %s377 = sand.u32 %s187, 1
        %s378 = scalar_lea.sflag [#allocation5], %s377
        %s379 = sand.u32 %s187, 1
        %s380 = smul.addr %s379, 32
        %s381 = scalar_lea.vmem [#allocation15], %s380
        %v383 = vld [vmem:[#allocation6] sm:$0xff]
        %v384 = vld [vmem:[#allocation6 + $0x8] sm:$0xf]
        %v385 = vld [vmem:[#allocation6 + $0xc] sm:$0xff]
        %v386 = vld [vmem:[#allocation6 + $0x14] sm:$0xf]
        %v387 = vld [vmem:[#allocation6 + $0x18] sm:$0xff]
        %v388 = vld [vmem:[#allocation6 + $0x20] sm:$0xf]
        %v389 = vld [vmem:[#allocation6 + $0x24] sm:$0xff]
        %v390 = vld [vmem:[#allocation6 + $0x2c] sm:$0xf]
        %v391 = vld [vmem:[#allocation8] sm:$0xff]
        %v392 = vld [vmem:[#allocation8 + $0x8] sm:$0xff]
        %v393 = vld [vmem:[#allocation8 + $0x10] sm:$0xff]
        %v394 = vld [vmem:[#allocation8 + $0x18] sm:$0xff]
        %v395 = vld [vmem:[#allocation14] sm:$0x1]
        %v396 = vld [vmem:[%s327] sm:$0xf]
        %v397 = vld [vmem:[%s327 + $0x4] sm:$0xf]
        %v398 = vld [vmem:[%s327 + $0x8] sm:$0xf]
        %v399 = vld [vmem:[%s327 + $0xc] sm:$0xf]
        %v404 = vunpack.c.l.b16 %v396
        %v405 = vunpack.c.l.b16 %v397
        %v406 = vunpack.c.l.b16 %v398
        %v407 = vunpack.c.l.b16 %v399
        %v408 = vpack.c.b16 %v405, %v404
        %v409 = vpack.c.b16 %v407, %v406
        %412 = vrot.lane.b32.xlu0 %v408, 127
        %v413 = vpop.permute.xlu0 %412
        %414 = vrot.lane.b32.xlu0 %v409, 127
        %v415 = vpop.permute.xlu0 %414
        %418 = vrot.lane.b32.xlu0 %v408, 126
        %v419 = vpop.permute.xlu0 %418
        %420 = vrot.lane.b32.xlu0 %v409, 126
        %v421 = vpop.permute.xlu0 %420
        %424 = vrot.lane.b32.xlu0 %v408, 118
        %v425 = vpop.permute.xlu0 %424
        %426 = vrot.lane.b32.xlu0 %v409, 118
        %v427 = vpop.permute.xlu0 %426
        %430 = vrot.lane.b32.xlu0 %v408, 117
        %v431 = vpop.permute.xlu0 %430
        %432 = vrot.lane.b32.xlu0 %v409, 117
        %v433 = vpop.permute.xlu0 %432
        %436 = vrot.lane.b32.xlu0 %v408, 116
        %v437 = vpop.permute.xlu0 %436
        %438 = vrot.lane.b32.xlu0 %v409, 116
        %v439 = vpop.permute.xlu0 %438
        %442 = vrot.lane.b32.xlu0 %v408, 108
        %v443 = vpop.permute.xlu0 %442
        %444 = vrot.lane.b32.xlu0 %v409, 108
        %v445 = vpop.permute.xlu0 %444
        %448 = vrot.lane.b32.xlu0 %v408, 107
        %v449 = vpop.permute.xlu0 %448
        %450 = vrot.lane.b32.xlu0 %v409, 107
        %v451 = vpop.permute.xlu0 %450
        %454 = vrot.lane.b32.xlu0 %v408, 106
        %v455 = vpop.permute.xlu0 %454
        %456 = vrot.lane.b32.xlu0 %v409, 106
        %v457 = vpop.permute.xlu0 %456
        %461 = vset.pattern.permute.xlu0 0
        %462 = vperm.xlu0 %461, %v391
        %v463 = vpop.permute.xlu0 %462
        %466 = vset.pattern.permute.xlu0 0
        %467 = vperm.xlu0 %466, %v392
        %v468 = vpop.permute.xlu0 %467
        %471 = vset.pattern.permute.xlu0 0
        %472 = vperm.xlu0 %471, %v393
        %v473 = vpop.permute.xlu0 %472
        %476 = vset.pattern.permute.xlu0 0
        %477 = vperm.xlu0 %476, %v394
        %v478 = vpop.permute.xlu0 %477
        %v488 = vunpack.c.l.b16 %v383
        %v489 = vunpack.c.h.b16 %v383
        %v490 = vunpack.c.l.b16 %v384
        %v491 = vunpack.c.l.b16 %v385
        %v492 = vunpack.c.h.b16 %v385
        %v493 = vunpack.c.l.b16 %v386
        %v494 = vunpack.c.l.b16 %v387
        %v495 = vunpack.c.h.b16 %v387
        %v496 = vunpack.c.l.b16 %v388
        %v497 = vunpack.c.l.b16 %v389
        %v498 = vunpack.c.h.b16 %v389
        %v499 = vunpack.c.l.b16 %v390
        %v500 = vpack.c.b16 %v491, %v488
        %v501 = vpack.c.b16 %v492, %v489
        %v502 = vpack.c.b16 %v493, %v490
        %v503 = vpack.c.b16 %v497, %v494
        %v504 = vpack.c.b16 %v498, %v495
        %v505 = vpack.c.b16 %v499, %v496
        %vm510 = vcmask 261120
        %v512 = vsel %vm510, %v502, 0
        %v515 = vsel %vm510, %v505, 0
        %517 = vmatprep.subr.bf16.mxu0 0
        %518 = vmatpush1.bf16.msra.mxu0 %v408
        %519 = vmatprep.subr.bf16.mxu0 0
        %520 = vmatpush1.bf16.msra.mxu0 %v409
        %521 = vmatprep.subr.bf16.mxu0 0
        %522 = vmatpush1.bf16.msra.mxu0 %v413
        %523 = vmatprep.subr.bf16.mxu0 0
        %524 = vmatpush1.bf16.msra.mxu0 %v415
        %525 = vmatprep.subr.bf16.mxu0 0
        %526 = vmatpush1.bf16.msra.mxu0 %v419
        %527 = vmatprep.subr.bf16.mxu0 0
        %528 = vmatpush1.bf16.msra.mxu0 %v421
        %529 = vmatprep.subr.bf16.mxu0 0
        %530 = vmatpush1.bf16.msra.mxu0 %v425
        %531 = vmatprep.subr.bf16.mxu0 0
        %532 = vmatpush1.bf16.msra.mxu0 %v427
        %533 = vmatprep.subr.bf16.mxu0 0
        %534 = vmatpush1.bf16.msra.mxu0 %v431
        %535 = vmatprep.subr.bf16.mxu0 0
        %536 = vmatpush1.bf16.msra.mxu0 %v433
        %537 = vmatprep.subr.bf16.mxu0 0
        %538 = vmatpush1.bf16.msra.mxu0 %v437
        %539 = vmatprep.subr.bf16.mxu0 0
        %540 = vmatpush1.bf16.msra.mxu0 %v439
        %541 = vmatprep.subr.bf16.mxu0 0
        %542 = vmatpush1.bf16.msra.mxu0 %v443
        %543 = vmatprep.subr.bf16.mxu0 0
        %544 = vmatpush1.bf16.msra.mxu0 %v445
        %545 = vmatprep.subr.bf16.mxu0 0
        %546 = vmatpush1.bf16.msra.mxu0 %v449
        %547 = vmatprep.subr.bf16.mxu0 0
        %548 = vmatpush1.bf16.msra.mxu0 %v451
        %549 = vmatprep.mubr.bf16.mxu0 %v501
        %550 = vmatmul.mubr.bf16.gmra.mrb[0].mxu0 %v500
        %v551 = vpop.f32.mrb[0].mxu0
        %v552 = vadd.f32 %v463, %v551
        %v553 = vpop.f32.mrb[0].mxu0
        %v554 = vpop.f32.mrb[0].mxu0
        %v555 = vadd.f32 %v468, %v554
        %v556 = vpop.f32.mrb[0].mxu0
        %557 = vmatprep.mubr.bf16.mxu0 %v504
        %558 = vmatmul.mubr.bf16.gmra.mrb[0].mxu0 %v503
        %v559 = vpop.f32.mrb[0].mxu0
        %v560 = vadd.f32 %v473, %v559
        %v561 = vpop.f32.mrb[0].mxu0
        %v562 = vpop.f32.mrb[0].mxu0
        %v563 = vadd.f32 %v478, %v562
        %v564 = vpop.f32.mrb[0].mxu0
        %565 = vdwg.mxu0
        %566 = vmatprep.subr.bf16.mxu0 0
        %567 = vmatpush1.bf16.msra.mxu0 %v455
        %568 = vmatprep.subr.bf16.mxu0 0
        %569 = vmatpush1.bf16.msra.mxu0 %v457
        %570 = vmatprep.subr.bf16.mxu0 0
        %571 = vmatpush1.bf16.msra.mxu0 0
        %572 = vmatprep.subr.bf16.mxu0 0
        %573 = vmatpush1.bf16.msra.mxu0 0
        %574 = vmatprep.subr.bf16.mxu0 0
        %575 = vmatpush1.bf16.msra.mxu0 0
        %576 = vmatprep.subr.bf16.mxu0 0
        %577 = vmatpush1.bf16.msra.mxu0 0
        %578 = vmatprep.subr.bf16.mxu0 0
        %579 = vmatpush1.bf16.msra.mxu0 0
        %580 = vmatprep.subr.bf16.mxu0 0
        %581 = vmatpush1.bf16.msra.mxu0 0
        %582 = vmatprep.subr.bf16.mxu0 0
        %583 = vmatpush1.bf16.msra.mxu0 0
        %584 = vmatprep.subr.bf16.mxu0 0
        %585 = vmatpush1.bf16.msra.mxu0 0
        %586 = vmatprep.subr.bf16.mxu0 0
        %587 = vmatpush1.bf16.msra.mxu0 0
        %588 = vmatprep.subr.bf16.mxu0 0
        %589 = vmatpush1.bf16.msra.mxu0 0
        %590 = vmatprep.subr.bf16.mxu0 0
        %591 = vmatpush1.bf16.msra.mxu0 0
        %592 = vmatprep.subr.bf16.mxu0 0
        %593 = vmatpush1.bf16.msra.mxu0 0
        %594 = vmatprep.subr.bf16.mxu0 0
        %595 = vmatpush1.bf16.msra.mxu0 0
        %596 = vmatprep.subr.bf16.mxu0 0
        %597 = vmatpush1.bf16.msra.mxu0 0
        %598 = vmatprep.mubr.bf16.mxu0 0
        %599 = vmatmul.mubr.bf16.gmra.mrb[0].mxu0 %v512
        %v600 = vpop.f32.mrb[0].mxu0
        %v601 = vadd.f32 %v552, %v600
        %v602 = vpop.f32.mrb[0].mxu0
        %v603 = vpop.f32.mrb[0].mxu0
        %v604 = vadd.f32 %v555, %v603
        %v605 = vpop.f32.mrb[0].mxu0
        %606 = vmatprep.mubr.bf16.mxu0 0
        %607 = vmatmul.mubr.bf16.gmra.mrb[0].mxu0 %v515
        %v608 = vpop.f32.mrb[0].mxu0
        %v609 = vadd.f32 %v560, %v608
        %v610 = vpop.f32.mrb[0].mxu0
        %v611 = vpop.f32.mrb[0].mxu0
        %v612 = vadd.f32 %v563, %v611
        %v613 = vpop.f32.mrb[0].mxu0
        %614 = vdwg.mxu0
        %vm615 = vcmask 654336
        %616 = vst.msk [vmem:[#allocation2] sm:$0xff] %vm615, %v601
        %617 = vst.msk [vmem:[#allocation2 + $0x8] sm:$0xff] %vm615, %v604
        %618 = vst.msk [vmem:[#allocation2 + $0x10] sm:$0xff] %vm615, %v609
        %619 = vst.msk [vmem:[#allocation2 + $0x18] sm:$0xff] %vm615, %v612
        %v621 = vlaneseq
        %v622 = vshrl.u32 %v621, 7
        %v623 = vsub.s32 0, %v622
        %v624 = vrot.slane %v395, %v623
        %v626 = vmul.f32 %v601, %v624
        %v627 = vmul.f32 %v604, %v624
        %v628 = vmul.f32 %v609, %v624
        %v629 = vmul.f32 %v612, %v624
        %v630 = vsel %vm615, %v626, 0.0
        %631 = vadd.xlane.f32.xlu0 %v630
        %v632 = vpop.xlane.xlu0 %631
        %v633 = vsel %vm615, %v627, 0.0
        %634 = vadd.xlane.f32.xlu0 %v633
        %v635 = vpop.xlane.xlu0 %634
        %v636 = vsel %vm615, %v628, 0.0
        %637 = vadd.xlane.f32.xlu0 %v636
        %v638 = vpop.xlane.xlu0 %637
        %v639 = vsel %vm615, %v629, 0.0
        %640 = vadd.xlane.f32.xlu0 %v639
        %v641 = vpop.xlane.xlu0 %640
        %v642 = vadd.f32 %v632, 0.0
        %v643 = vadd.f32 %v635, 0.0
        %v644 = vadd.f32 %v638, 0.0
        %v645 = vadd.f32 %v641, 0.0
        %v646 = vmul.f32 %v626, %v601
        %v647 = vmul.f32 %v627, %v604
        %v648 = vmul.f32 %v628, %v609
        %v649 = vmul.f32 %v629, %v612
        %v650 = vsel %vm615, %v646, 0.0
        %651 = vadd.xlane.f32.xlu0 %v650
        %v652 = vpop.xlane.xlu0 %651
        %v653 = vsel %vm615, %v647, 0.0
        %654 = vadd.xlane.f32.xlu0 %v653
        %v655 = vpop.xlane.xlu0 %654
        %v656 = vsel %vm615, %v648, 0.0
        %657 = vadd.xlane.f32.xlu0 %v656
        %v658 = vpop.xlane.xlu0 %657
        %v659 = vsel %vm615, %v649, 0.0
        %660 = vadd.xlane.f32.xlu0 %v659
        %v661 = vpop.xlane.xlu0 %660
        %v662 = vadd.f32 %v652, 0.0
        %v663 = vadd.f32 %v655, 0.0
        %v664 = vadd.f32 %v658, 0.0
        %v665 = vadd.f32 %v661, 0.0
        %vm666 = vcmask 7168
        %v667 = vsel %vm666, %v642, %v662
        %v668 = vsel %vm666, %v643, %v663
        %v669 = vsel %vm666, %v644, %v664
        %v670 = vsel %vm666, %v645, %v665
        %v671 = vld [vmem:[#allocation12] sm:$0xff]
        %v672 = vld [vmem:[#allocation12 + $0x8] sm:$0xff]
        %v673 = vld [vmem:[#allocation12 + $0x10] sm:$0xff]
        %v674 = vld [vmem:[#allocation12 + $0x18] sm:$0xff]
        %v676 = vsel %vm510, %v671, 0
        %v679 = vsel %vm510, %v672, 0
        %v682 = vsel %vm510, %v673, 0
        %v685 = vsel %vm510, %v674, 0
        %687 = vmatprep.subr.mxu0 0.0
        %688 = vmatpush1.msra.mxu0 %v667
        %689 = vmatprep.subr.mxu0 0.0
        %690 = vmatpush1.msra.mxu0 %v668
        %691 = vmatprep.subr.mxu0 0.0
        %692 = vmatpush1.msra.mxu0 %v669
        %693 = vmatprep.subr.mxu0 0.0
        %694 = vmatpush1.msra.mxu0 %v670
        %695 = vmatprep.subr.mxu0 0.0
        %696 = vmatpush1.msra.mxu0 0.0
        %697 = vmatprep.subr.mxu0 0.0
        %698 = vmatpush1.msra.mxu0 0.0
        %699 = vmatprep.subr.mxu0 0.0
        %700 = vmatpush1.msra.mxu0 0.0
        %701 = vmatprep.subr.mxu0 0.0
        %702 = vmatpush1.msra.mxu0 0.0
        %703 = vmatprep.subr.mxu0 0.0
        %704 = vmatpush1.msra.mxu0 0.0
        %705 = vmatprep.subr.mxu0 0.0
        %706 = vmatpush1.msra.mxu0 0.0
        %707 = vmatprep.subr.mxu0 0.0
        %708 = vmatpush1.msra.mxu0 0.0
        %709 = vmatprep.subr.mxu0 0.0
        %710 = vmatpush1.msra.mxu0 0.0
        %711 = vmatprep.subr.mxu0 0.0
        %712 = vmatpush1.msra.mxu0 0.0
        %713 = vmatprep.subr.mxu0 0.0
        %714 = vmatpush1.msra.mxu0 0.0
        %715 = vmatprep.subr.mxu0 0.0
        %716 = vmatpush1.msra.mxu0 0.0
        %717 = vmatprep.subr.mxu0 0.0
        %718 = vmatpush1.msra.mxu0 0.0
        %719 = vmatprep.subr.mxu0 0.0
        %720 = vmatpush1.msra.mxu0 0.0
        %721 = vmatprep.subr.mxu0 0.0
        %722 = vmatpush1.msra.mxu0 0.0
        %723 = vmatprep.subr.mxu0 0.0
        %724 = vmatpush1.msra.mxu0 0.0
        %725 = vmatprep.subr.mxu0 0.0
        %726 = vmatpush1.msra.mxu0 0.0
        %727 = vmatprep.subr.mxu0 0.0
        %728 = vmatpush1.msra.mxu0 0.0
        %729 = vmatprep.subr.mxu0 0.0
        %730 = vmatpush1.msra.mxu0 0.0
        %731 = vmatprep.subr.mxu0 0.0
        %732 = vmatpush1.msra.mxu0 0.0
        %733 = vmatprep.subr.mxu0 0.0
        %734 = vmatpush1.msra.mxu0 0.0
        %735 = vmatprep.subr.mxu0 0.0
        %736 = vmatpush1.msra.mxu0 0.0
        %737 = vmatprep.subr.mxu0 0.0
        %738 = vmatpush1.msra.mxu0 0.0
        %739 = vmatprep.subr.mxu0 0.0
        %740 = vmatpush1.msra.mxu0 0.0
        %741 = vmatprep.subr.mxu0 0.0
        %742 = vmatpush1.msra.mxu0 0.0
        %743 = vmatprep.subr.mxu0 0.0
        %744 = vmatpush1.msra.mxu0 0.0
        %745 = vmatprep.subr.mxu0 0.0
        %746 = vmatpush1.msra.mxu0 0.0
        %747 = vmatprep.subr.mxu0 0.0
        %748 = vmatpush1.msra.mxu0 0.0
        %749 = vmatprep.subr.mxu0 0.0
        %750 = vmatpush1.msra.mxu0 0.0
        %751 = vmatprep.mubr.f32.mxu0 0.0
        %752 = vmatmul.mubr.f32.gmra.mrb[0].mxu0 %v676
        %v753 = vpop.f32.mrb[0].mxu0
        %v754 = vadd.f32 0.0, %v753
        %v755 = vpop.f32.mrb[0].mxu0
        %756 = vmatprep.mubr.f32.mxu0 0.0
        %757 = vmatmul.mubr.f32.gmra.mrb[0].mxu0 %v679
        %v758 = vpop.f32.mrb[0].mxu0
        %v759 = vadd.f32 0.0, %v758
        %v760 = vpop.f32.mrb[0].mxu0
        %761 = vmatprep.mubr.f32.mxu0 0.0
        %762 = vmatmul.mubr.f32.gmra.mrb[0].mxu0 %v682
        %v763 = vpop.f32.mrb[0].mxu0
        %v764 = vadd.f32 0.0, %v763
        %v765 = vpop.f32.mrb[0].mxu0
        %766 = vmatprep.mubr.f32.mxu0 0.0
        %767 = vmatmul.mubr.f32.gmra.mrb[0].mxu0 %v685
        %v768 = vpop.f32.mrb[0].mxu0
        %v769 = vadd.f32 0.0, %v768
        %v770 = vpop.f32.mrb[0].mxu0
        %771 = vdwg.mxu0
        %v772 = vmul.f32 %v754, 0.0078125
        %v773 = vmul.f32 %v759, 0.0078125
        %v774 = vmul.f32 %v764, 0.0078125
        %v775 = vmul.f32 %v769, 0.0078125
        %v776 = vmul.f32 %v772, %v772
        %v777 = vmul.f32 %v773, %v773
        %v778 = vmul.f32 %v774, %v774
        %v779 = vmul.f32 %v775, %v775
        %784 = vrot.lane.b32.xlu0 %v776, 1
        %v785 = vpop.permute.xlu0 %784
        %786 = vrot.lane.b32.xlu0 %v777, 1
        %v787 = vpop.permute.xlu0 %786
        %788 = vrot.lane.b32.xlu0 %v778, 1
        %v789 = vpop.permute.xlu0 %788
        %790 = vrot.lane.b32.xlu0 %v779, 1
        %v791 = vpop.permute.xlu0 %790
        %v796 = vsub.f32 %v772, %v785
        %v797 = vsub.f32 %v773, %v787
        %v798 = vsub.f32 %v774, %v789
        %v799 = vsub.f32 %v775, %v791
        %v800 = vmax.f32 %v796, 0.0
        %v801 = vmax.f32 %v797, 0.0
        %v802 = vmax.f32 %v798, 0.0
        %v803 = vmax.f32 %v799, 0.0
        %v804 = vld [vmem:[#allocation9] sm:$0xff]
        %v805 = vld [vmem:[#allocation9 + $0x8] sm:$0xff]
        %v806 = vld [vmem:[#allocation9 + $0x10] sm:$0xff]
        %v807 = vld [vmem:[#allocation9 + $0x18] sm:$0xff]
        %v808 = vadd.f32 %v800, 1e-05
        %v809 = vadd.f32 %v801, 1e-05
        %v810 = vadd.f32 %v802, 1e-05
        %v811 = vadd.f32 %v803, 1e-05
        %v812 = vrsqrt.pop %v808
        %v813 = vrsqrt.pop %v809
        %v814 = vrsqrt.pop %v810
        %v815 = vrsqrt.pop %v811
        %820 = vrot.lane.b32.xlu0 %v812, 127
        %v821 = vpop.permute.xlu0 %820
        %822 = vrot.lane.b32.xlu0 %v813, 127
        %v823 = vpop.permute.xlu0 %822
        %824 = vrot.lane.b32.xlu0 %v814, 127
        %v825 = vpop.permute.xlu0 %824
        %826 = vrot.lane.b32.xlu0 %v815, 127
        %v827 = vpop.permute.xlu0 %826
        %v832 = vmul.f32 %v804, %v821
        %v833 = vmul.f32 %v805, %v823
        %v834 = vmul.f32 %v806, %v825
        %v835 = vmul.f32 %v807, %v827
        %v836 = vld [vmem:[#allocation11] sm:$0xff]
        %v837 = vld [vmem:[#allocation11 + $0x8] sm:$0xff]
        %v838 = vld [vmem:[#allocation11 + $0x10] sm:$0xff]
        %v839 = vld [vmem:[#allocation11 + $0x18] sm:$0xff]
        %v840 = vmul.f32 %v772, %v832
        %v841 = vmul.f32 %v773, %v833
        %v842 = vmul.f32 %v774, %v834
        %v843 = vmul.f32 %v775, %v835
        %v844 = vsub.f32 %v836, %v840
        %v845 = vsub.f32 %v837, %v841
        %v846 = vsub.f32 %v838, %v842
        %v847 = vsub.f32 %v839, %v843
        %v848 = vld [vmem:[#allocation2] sm:$0xff]
        %v849 = vld [vmem:[#allocation2 + $0x8] sm:$0xff]
        %v850 = vld [vmem:[#allocation2 + $0x10] sm:$0xff]
        %v851 = vld [vmem:[#allocation2 + $0x18] sm:$0xff]
        %853 = vset.pattern.permute.xlu0 0
        %854 = vperm.xlu0 %853, %v832
        %v855 = vpop.permute.xlu0 %854
        %858 = vset.pattern.permute.xlu0 0
        %859 = vperm.xlu0 %858, %v833
        %v860 = vpop.permute.xlu0 %859
        %863 = vset.pattern.permute.xlu0 0
        %864 = vperm.xlu0 %863, %v834
        %v865 = vpop.permute.xlu0 %864
        %868 = vset.pattern.permute.xlu0 0
        %869 = vperm.xlu0 %868, %v835
        %v870 = vpop.permute.xlu0 %869
        %v872 = vmul.f32 %v848, %v855
        %v873 = vmul.f32 %v849, %v860
        %v874 = vmul.f32 %v850, %v865
        %v875 = vmul.f32 %v851, %v870
        %877 = vset.pattern.permute.xlu0 0
        %878 = vperm.xlu0 %877, %v844
        %v879 = vpop.permute.xlu0 %878
        %882 = vset.pattern.permute.xlu0 0
        %883 = vperm.xlu0 %882, %v845
        %v884 = vpop.permute.xlu0 %883
        %887 = vset.pattern.permute.xlu0 0
        %888 = vperm.xlu0 %887, %v846
        %v889 = vpop.permute.xlu0 %888
        %892 = vset.pattern.permute.xlu0 0
        %893 = vperm.xlu0 %892, %v847
        %v894 = vpop.permute.xlu0 %893
        %v896 = vadd.f32 %v872, %v879
        %v897 = vadd.f32 %v873, %v884
        %v898 = vadd.f32 %v874, %v889
        %v899 = vadd.f32 %v875, %v894
        %vm900 = vcmp.gt.f32.partialorder %v896, 0.0
        %vm901 = vcmp.gt.f32.partialorder %v897, 0.0
        %vm902 = vcmp.gt.f32.partialorder %v898, 0.0
        %vm903 = vcmp.gt.f32.partialorder %v899, 0.0
        %v904 = vmul.f32 %v896, 0.2
        %v905 = vmul.f32 %v897, 0.2
        %v906 = vmul.f32 %v898, 0.2
        %v907 = vmul.f32 %v899, 0.2
        %v908 = vsel %vm900, %v896, %v904
        %v909 = vsel %vm901, %v897, %v905
        %v910 = vsel %vm902, %v898, %v906
        %v911 = vsel %vm903, %v899, %v907
        %vm912 = vcmask 64512
        %913 = vst.msk [vmem:[%s381] sm:$0xff] %vm912, %v908
        %914 = vst.msk [vmem:[%s381 + $0x8] sm:$0xff] %vm912, %v909
        %915 = vst.msk [vmem:[%s381 + $0x10] sm:$0xff] %vm912, %v910
        %916 = vst.msk [vmem:[%s381 + $0x18] sm:$0xff] %vm912, %v911
        %921 = vrot.lane.b32.xlu0 %v908, 126
        %v922 = vpop.permute.xlu0 %921
        %923 = vrot.lane.b32.xlu0 %v909, 126
        %v924 = vpop.permute.xlu0 %923
        %925 = vrot.lane.b32.xlu0 %v910, 126
        %v926 = vpop.permute.xlu0 %925
        %927 = vrot.lane.b32.xlu0 %v911, 126
        %v928 = vpop.permute.xlu0 %927
        %vm933 = vcmask 130112
        %934 = vst.msk [vmem:[%s381] sm:$0xff] %vm933, %v922
        %935 = vst.msk [vmem:[%s381 + $0x8] sm:$0xff] %vm933, %v924
        %936 = vst.msk [vmem:[%s381 + $0x10] sm:$0xff] %vm933, %v926
        %937 = vst.msk [vmem:[%s381 + $0x18] sm:$0xff] %vm933, %v928
        %938 = vrot.lane.b32.xlu0 %v908, 124
        %v939 = vpop.permute.xlu0 %938
        %940 = vrot.lane.b32.xlu0 %v909, 124
        %v941 = vpop.permute.xlu0 %940
        %942 = vrot.lane.b32.xlu0 %v910, 124
        %v943 = vpop.permute.xlu0 %942
        %944 = vrot.lane.b32.xlu0 %v911, 124
        %v945 = vpop.permute.xlu0 %944
        %vm950 = vcmask 195712
        %951 = vst.msk [vmem:[%s381] sm:$0xff] %vm950, %v939
        %952 = vst.msk [vmem:[%s381 + $0x8] sm:$0xff] %vm950, %v941
        %953 = vst.msk [vmem:[%s381 + $0x10] sm:$0xff] %vm950, %v943
        %954 = vst.msk [vmem:[%s381 + $0x18] sm:$0xff] %vm950, %v945
        %955 = vrot.lane.b32.xlu0 %v908, 122
        %v956 = vpop.permute.xlu0 %955
        %957 = vrot.lane.b32.xlu0 %v909, 122
        %v958 = vpop.permute.xlu0 %957
        %959 = vrot.lane.b32.xlu0 %v910, 122
        %v960 = vpop.permute.xlu0 %959
        %961 = vrot.lane.b32.xlu0 %v911, 122
        %v962 = vpop.permute.xlu0 %961
        %vm967 = vcmask 261312
        %968 = vst.msk [vmem:[%s381] sm:$0xff] %vm967, %v956
        %969 = vst.msk [vmem:[%s381 + $0x8] sm:$0xff] %vm967, %v958
        %970 = vst.msk [vmem:[%s381 + $0x10] sm:$0xff] %vm967, %v960
        %971 = vst.msk [vmem:[%s381 + $0x18] sm:$0xff] %vm967, %v962
        %972 = vrot.lane.b32.xlu0 %v908, 120
        %v973 = vpop.permute.xlu0 %972
        %974 = vrot.lane.b32.xlu0 %v909, 120
        %v975 = vpop.permute.xlu0 %974
        %976 = vrot.lane.b32.xlu0 %v910, 120
        %v977 = vpop.permute.xlu0 %976
        %978 = vrot.lane.b32.xlu0 %v911, 120
        %v979 = vpop.permute.xlu0 %978
        %vm984 = vcmask 326912
        %985 = vst.msk [vmem:[%s381] sm:$0xff] %vm984, %v973
        %986 = vst.msk [vmem:[%s381 + $0x8] sm:$0xff] %vm984, %v975
        %987 = vst.msk [vmem:[%s381 + $0x10] sm:$0xff] %vm984, %v977
        %988 = vst.msk [vmem:[%s381 + $0x18] sm:$0xff] %vm984, %v979
        %989 = vrot.lane.b32.xlu0 %v908, 118
        %v990 = vpop.permute.xlu0 %989
        %991 = vrot.lane.b32.xlu0 %v909, 118
        %v992 = vpop.permute.xlu0 %991
        %993 = vrot.lane.b32.xlu0 %v910, 118
        %v994 = vpop.permute.xlu0 %993
        %995 = vrot.lane.b32.xlu0 %v911, 118
        %v996 = vpop.permute.xlu0 %995
        %vm1001 = vcmask 392512
        %1002 = vst.msk [vmem:[%s381] sm:$0xff] %vm1001, %v990
        %1003 = vst.msk [vmem:[%s381 + $0x8] sm:$0xff] %vm1001, %v992
        %1004 = vst.msk [vmem:[%s381 + $0x10] sm:$0xff] %vm1001, %v994
        %1005 = vst.msk [vmem:[%s381 + $0x18] sm:$0xff] %vm1001, %v996
        %1006 = vrot.lane.b32.xlu0 %v908, 116
        %v1007 = vpop.permute.xlu0 %1006
        %1008 = vrot.lane.b32.xlu0 %v909, 116
        %v1009 = vpop.permute.xlu0 %1008
        %1010 = vrot.lane.b32.xlu0 %v910, 116
        %v1011 = vpop.permute.xlu0 %1010
        %1012 = vrot.lane.b32.xlu0 %v911, 116
        %v1013 = vpop.permute.xlu0 %1012
        %vm1018 = vcmask 458112
        %1019 = vst.msk [vmem:[%s381] sm:$0xff] %vm1018, %v1007
        %1020 = vst.msk [vmem:[%s381 + $0x8] sm:$0xff] %vm1018, %v1009
        %1021 = vst.msk [vmem:[%s381 + $0x10] sm:$0xff] %vm1018, %v1011
        %1022 = vst.msk [vmem:[%s381 + $0x18] sm:$0xff] %vm1018, %v1013
        %1023 = vrot.lane.b32.xlu0 %v908, 114
        %v1024 = vpop.permute.xlu0 %1023
        %1025 = vrot.lane.b32.xlu0 %v909, 114
        %v1026 = vpop.permute.xlu0 %1025
        %1027 = vrot.lane.b32.xlu0 %v910, 114
        %v1028 = vpop.permute.xlu0 %1027
        %1029 = vrot.lane.b32.xlu0 %v911, 114
        %v1030 = vpop.permute.xlu0 %1029
        %vm1035 = vcmask 523712
        %1036 = vst.msk [vmem:[%s381] sm:$0xff] %vm1035, %v1024
        %1037 = vst.msk [vmem:[%s381 + $0x8] sm:$0xff] %vm1035, %v1026
        %1038 = vst.msk [vmem:[%s381 + $0x10] sm:$0xff] %vm1035, %v1028
        %1039 = vst.msk [vmem:[%s381 + $0x18] sm:$0xff] %vm1035, %v1030
        %s1040 = sand.u32 %s187, 1
        %s1041 = scalar_lea.sflag [#allocation5], %s1040
        %s1042 = sand.u32 %s187, 1
        %s1043 = smul.addr %s1042, 32
        %s1044 = scalar_lea.vmem [#allocation15], %s1043
        // Predicated region
        $region77: #{down_block_forward.3} parent=47 // pred_check
          %p1045 = pneg %p197
        $region78: #{down_block_forward.3} parent=47 // pred_check_branch
          %1047 = sbr.rel (%p1045) target = $region80
        $region79: #{down_block_forward.3} parent=47 // pred_region
          %s1049 = ssub.s32 512, 512
          %1050 = vsyncadd %s1041, %s1049
          %s1051 = smul.addr %s27, 4
          %s1052 = smul.addr %s1051, 128
          %s1053 = scalar_lea.hbm %s7, %s1052
          %s1054 = sshll.u32 %s1044, 4
          %s1055 = int_to_ptr.vmem [resolvable:$true] %s1054
          %1060 = dma.vmem_to_hbm [thread:$0]  %s1055, 512, %s1053, %s1041, 128, 128, 8
        $region80: #{down_block_forward.3} parent=47 // pred_fallthru
          _
      $region48: #{down_block_forward.3} parent=5 // pred_fallthru
        _
      %p1061 = scmp.le.s32.totalorder 2, %s22
      // Predicated region
      $region81: #{down_block_forward.3} parent=5 // pred_check
        %p1062 = pneg %p1061
      $region82: #{down_block_forward.3} parent=5 // pred_check_branch
        %1064 = sbr.rel (%p1062) target = $region84
      $region83: #{down_block_forward.3} parent=5 // pred_region
        %s1065 = ssub.s32 %s22, 2
        // Predicated region
        $region85: #{down_block_forward.3} parent=83 // pred_check
          %p1066 = pneg %p203
        $region86: #{down_block_forward.3} parent=83 // pred_check_branch
          %1068 = sbr.rel (%p1066) target = $region88
        $region87: #{down_block_forward.3} parent=83 // pred_region
          %s1069 = sand.u32 %s188, 1
          %s1070 = scalar_lea.sflag [#allocation5], %s1069
          %s1071 = sand.u32 %s188, 1
          %s1072 = smul.addr %s1071, 32
          %s1073 = scalar_lea.vmem [#allocation15], %s1072
          %1074 = dma.done %s1070, 512
        $region88: #{down_block_forward.3} parent=83 // pred_fallthru
          _
      $region84: #{down_block_forward.3} parent=5 // pred_fallthru
        _
    $region6: #{down_block_forward.3} parent=1 // loop_footer
      %s26 = sadd.s32 1, %s22
    $region7: #{down_block_forward.3} parent=1 // loop_footer_branch
      %21 = sbr.rel target = $region3
    $region8: #{down_block_forward.3} parent=1 // loop_exit
      _
    %1075 = vsyncpa [#allocation4], 1
    %s1076 = scalar_lea.sflag [#allocation4], 1
    %1077 = vsyncpa %s1076, 1
    %1078 = vsyncpa [#allocation7], 1
    %1079 = vsyncpa [#allocation10], 1
    %1080 = vsyncpa [#allocation13], 1
    %1081 = vsyncpa [#allocation5], 1
    %s1082 = scalar_lea.sflag [#allocation5], 1
    %1083 = vsyncpa %s1082, 1

// kernel: down_block_forward.2
$region0: #{down_block_forward.2}
  #allocation0 [shape = 'u32[]', space=smem, size = 0x4, offset = 0x4, fixed_abs, tag = 'smem constant byte address 0x4 - core index']
  #allocation1 [shape = 'u32[144,128]{1,0:T(1,128)}', space=vmem, size = 0x12000, scoped, tag = 'internal scratch']
  #allocation2 [shape = 'f32[1,32,80]{2,1,0:T(8,128)}', space=vmem, size = 0x4000, scoped, tag = 'scratch operand']
  %s0 = inlined_call_operand.hbm [shape: bf16[2,16,100], index: 0, kind: input, shape index: {}]
  %s1 = inlined_call_operand.hbm [shape: bf16[32,64], index: 1, kind: input, shape index: {}]
  %s2 = inlined_call_operand.hbm [shape: f32[32,1], index: 2, kind: input, shape index: {}]
  %s3 = inlined_call_operand.hbm [shape: f32[32,1], index: 3, kind: input, shape index: {}]
  %s4 = inlined_call_operand.hbm [shape: f32[32,1], index: 4, kind: input, shape index: {}]
  %s5 = inlined_call_operand.hbm [shape: f32[32,32], index: 5, kind: input, shape index: {}]
  %s6 = inlined_call_operand.hbm [shape: f32[1,80], index: 6, kind: input, shape index: {}]
  %s7 = inlined_call_operand.hbm [shape: bf16[2,32,110], index: 7, kind: output, shape index: {}]
  %s8 = sld [smem:[#allocation0]]
  $region89: #{down_block_forward.2} parent=0
    _
  %s10 = ssub.s32 1, %s8
  %s11 = scalar_select 0, %s10, %s8
  $region1: #{down_block_forward.2} parent=0
    #allocation3 [shape = 'u8[8192]{0}', space=vmem, size = 0x2000, scoped, tag = 'input window, operand 0']
    #allocation4 [shape = 's32[2]{0}', space=sflag, size = 0x8, scoped, tag = 'scoped memory for down_block_forward.2']
    #allocation5 [shape = 's32[2]{0}', space=sflag, size = 0x8, scoped, tag = 'scoped memory for down_block_forward.2']
    #allocation6 [shape = 'u8[8192]{0}', space=vmem, size = 0x2000, scoped, tag = 'input window, operand 1, single buffered']
    #allocation7 [shape = 's32[1]{0}', space=sflag, size = 0x4, scoped, tag = 'scoped memory for down_block_forward.2']
    #allocation8 [shape = 'u8[16384]{0}', space=vmem, size = 0x4000, scoped, tag = 'input window, operand 2, single buffered']
    #allocation9 [shape = 'u8[16384]{0}', space=vmem, size = 0x4000, scoped, tag = 'input window, operand 3, single buffered']
    #allocation10 [shape = 's32[1]{0}', space=sflag, size = 0x4, scoped, tag = 'scoped memory for down_block_forward.2']
    #allocation11 [shape = 'u8[16384]{0}', space=vmem, size = 0x4000, scoped, tag = 'input window, operand 4, single buffered']
    #allocation12 [shape = 'u8[16384]{0}', space=vmem, size = 0x4000, scoped, tag = 'input window, operand 5, single buffered']
    #allocation13 [shape = 's32[1]{0}', space=sflag, size = 0x4, scoped, tag = 'scoped memory for down_block_forward.2']
    #allocation14 [shape = 'u8[512]{0}', space=vmem, size = 0x400, scoped, tag = 'input window, operand 6, single buffered']
    #allocation15 [shape = 'u8[16384]{0}', space=vmem, size = 0x4000, scoped, tag = 'output window, operand 0']
    %12 = vsyncpa [#allocation4], 0
    %s13 = scalar_lea.sflag [#allocation4], 1
    %14 = vsyncpa %s13, 0
    %15 = vsyncpa [#allocation7], 0
    %16 = vsyncpa [#allocation10], 0
    %17 = vsyncpa [#allocation13], 0
    %18 = vsyncpa [#allocation5], 0
    %s19 = scalar_lea.sflag [#allocation5], 1
    %20 = vsyncpa %s19, 0
    loop: start=0, step=1, limit=4
    $region2: #{down_block_forward.2} parent=1 // loop_pre_header
      _
    $region3: #{down_block_forward.2} parent=1 // loop_header
      %s22 = sphi 0, %s26
      %p23 = scmp.ge.s32.totalorder %s22, 4
      %s32 = sphi 0, %s34
      %s35 = sphi 0, %s32
      %s36 = sphi 0, %s35
      %s52 = sphi 0, %s36
      %s56 = sphi 0, %s56
      %s58 = sphi 0, %s56
      %s59 = sphi 0, %s58
      %s73 = sphi 0, %s59
      %s77 = sphi 0, %s77
      %s79 = sphi 0, %s77
      %s80 = sphi 0, %s79
      %s94 = sphi 0, %s80
      %s98 = sphi 0, %s98
      %s100 = sphi 0, %s98
      %s101 = sphi 0, %s100
      %s115 = sphi 0, %s101
      %s119 = sphi 0, %s119
      %s121 = sphi 0, %s119
      %s122 = sphi 0, %s121
      %s136 = sphi 0, %s122
      %s140 = sphi 0, %s140
      %s142 = sphi 0, %s140
      %s143 = sphi 0, %s142
      %s157 = sphi 0, %s143
      %s161 = sphi 0, %s161
      %s163 = sphi 0, %s161
      %s164 = sphi 0, %s163
      %s178 = sphi 0, %s164
      %s184 = sphi 0, %s186
      %s187 = sphi 0, %s184
      %s188 = sphi 0, %s187
      %s204 = sphi 0, %s188
    $region4: #{down_block_forward.2} parent=1 // loop_header_branch
      %25 = sbr.rel (%p23) target = $region8
    $region5: #{down_block_forward.2} parent=1 // loop_body
      %s27 = ssub.s32 %s22, 1
      %s28 = ssub.s32 %s22, 2
      %s29 = sadd.s32 %s22, 1
      %s30 = ssub.s32 %s22, %s29
      %p31 = scmp.eq.s32.totalorder %s30, 0
      %s33 = sadd.s32 %s32, 1
      %s34 = scalar_select %p31, %s32, %s33
      %p37 = pneg %p31
      %p38 = scmp.eq.s32.totalorder %s22, 1
      %p39 = por %p37, %p38
      %p40 = scmp.ne.s32.totalorder %s32, %s35
      %p41 = scmp.eq.s32.totalorder %s22, 0
      %p42 = por %p40, %p41
      %p43 = scmp.ne.s32.totalorder %s32, %s35
      %p44 = scmp.eq.s32.totalorder %s27, 1
      %p45 = por %p43, %p44
      %p46 = scmp.ne.s32.totalorder %s35, %s36
      %p47 = scmp.eq.s32.totalorder %s27, 0
      %p48 = por %p46, %p47
      %p49 = scmp.ne.s32.totalorder %s35, %s36
      %p50 = scmp.eq.s32.totalorder %s28, 1
      %p51 = por %p49, %p50
      %p53 = scmp.ne.s32.totalorder %s36, %s52
      %p54 = scmp.eq.s32.totalorder %s28, 0
      %p55 = por %p53, %p54
      %s57 = sadd.s32 %s56, 1
      %p60 = scmp.eq.s32.totalorder %s22, 1
      %p61 = scmp.ne.s32.totalorder %s56, %s58
      %p62 = scmp.eq.s32.totalorder %s22, 0
      %p63 = por %p61, %p62
      %p64 = scmp.ne.s32.totalorder %s56, %s58
      %p65 = scmp.eq.s32.totalorder %s27, 1
      %p66 = por %p64, %p65
      %p67 = scmp.ne.s32.totalorder %s58, %s59
      %p68 = scmp.eq.s32.totalorder %s27, 0
      %p69 = por %p67, %p68
      %p70 = scmp.ne.s32.totalorder %s58, %s59
      %p71 = scmp.eq.s32.totalorder %s28, 1
      %p72 = por %p70, %p71
      %p74 = scmp.ne.s32.totalorder %s59, %s73
      %p75 = scmp.eq.s32.totalorder %s28, 0
      %p76 = por %p74, %p75
      %s78 = sadd.s32 %s77, 1
      %p81 = scmp.eq.s32.totalorder %s22, 1
      %p82 = scmp.ne.s32.totalorder %s77, %s79
      %p83 = scmp.eq.s32.totalorder %s22, 0
      %p84 = por %p82, %p83
      %p85 = scmp.ne.s32.totalorder %s77, %s79
      %p86 = scmp.eq.s32.totalorder %s27, 1
      %p87 = por %p85, %p86
      %p88 = scmp.ne.s32.totalorder %s79, %s80
      %p89 = scmp.eq.s32.totalorder %s27, 0
      %p90 = por %p88, %p89
      %p91 = scmp.ne.s32.totalorder %s79, %s80
      %p92 = scmp.eq.s32.totalorder %s28, 1
      %p93 = por %p91, %p92
      %p95 = scmp.ne.s32.totalorder %s80, %s94
      %p96 = scmp.eq.s32.totalorder %s28, 0
      %p97 = por %p95, %p96
      %s99 = sadd.s32 %s98, 1
      %p102 = scmp.eq.s32.totalorder %s22, 1
      %p103 = scmp.ne.s32.totalorder %s98, %s100
      %p104 = scmp.eq.s32.totalorder %s22, 0
      %p105 = por %p103, %p104
      %p106 = scmp.ne.s32.totalorder %s98, %s100
      %p107 = scmp.eq.s32.totalorder %s27, 1
      %p108 = por %p106, %p107
      %p109 = scmp.ne.s32.totalorder %s100, %s101
      %p110 = scmp.eq.s32.totalorder %s27, 0
      %p111 = por %p109, %p110
      %p112 = scmp.ne.s32.totalorder %s100, %s101
      %p113 = scmp.eq.s32.totalorder %s28, 1
      %p114 = por %p112, %p113
      %p116 = scmp.ne.s32.totalorder %s101, %s115
      %p117 = scmp.eq.s32.totalorder %s28, 0
      %p118 = por %p116, %p117
      %s120 = sadd.s32 %s119, 1
      %p123 = scmp.eq.s32.totalorder %s22, 1
      %p124 = scmp.ne.s32.totalorder %s119, %s121
      %p125 = scmp.eq.s32.totalorder %s22, 0
      %p126 = por %p124, %p125
      %p127 = scmp.ne.s32.totalorder %s119, %s121
      %p128 = scmp.eq.s32.totalorder %s27, 1
      %p129 = por %p127, %p128
      %p130 = scmp.ne.s32.totalorder %s121, %s122
      %p131 = scmp.eq.s32.totalorder %s27, 0
      %p132 = por %p130, %p131
      %p133 = scmp.ne.s32.totalorder %s121, %s122
      %p134 = scmp.eq.s32.totalorder %s28, 1
      %p135 = por %p133, %p134
      %p137 = scmp.ne.s32.totalorder %s122, %s136
      %p138 = scmp.eq.s32.totalorder %s28, 0
      %p139 = por %p137, %p138
      %s141 = sadd.s32 %s140, 1
      %p144 = scmp.eq.s32.totalorder %s22, 1
      %p145 = scmp.ne.s32.totalorder %s140, %s142
      %p146 = scmp.eq.s32.totalorder %s22, 0
      %p147 = por %p145, %p146
      %p148 = scmp.ne.s32.totalorder %s140, %s142
      %p149 = scmp.eq.s32.totalorder %s27, 1
      %p150 = por %p148, %p149
      %p151 = scmp.ne.s32.totalorder %s142, %s143
      %p152 = scmp.eq.s32.totalorder %s27, 0
      %p153 = por %p151, %p152
      %p154 = scmp.ne.s32.totalorder %s142, %s143
      %p155 = scmp.eq.s32.totalorder %s28, 1
      %p156 = por %p154, %p155
      %p158 = scmp.ne.s32.totalorder %s143, %s157
      %p159 = scmp.eq.s32.totalorder %s28, 0
      %p160 = por %p158, %p159
      %s162 = sadd.s32 %s161, 1
      %p165 = scmp.eq.s32.totalorder %s22, 1
      %p166 = scmp.ne.s32.totalorder %s161, %s163
      %p167 = scmp.eq.s32.totalorder %s22, 0
      %p168 = por %p166, %p167
      %p169 = scmp.ne.s32.totalorder %s161, %s163
      %p170 = scmp.eq.s32.totalorder %s27, 1
      %p171 = por %p169, %p170
      %p172 = scmp.ne.s32.totalorder %s163, %s164
      %p173 = scmp.eq.s32.totalorder %s27, 0
      %p174 = por %p172, %p173
      %p175 = scmp.ne.s32.totalorder %s163, %s164
      %p176 = scmp.eq.s32.totalorder %s28, 1
      %p177 = por %p175, %p176
      %p179 = scmp.ne.s32.totalorder %s164, %s178
      %p180 = scmp.eq.s32.totalorder %s28, 0
      %p181 = por %p179, %p180
      %s182 = ssub.s32 %s22, %s29
      %p183 = scmp.eq.s32.totalorder %s182, 0
      %s185 = sadd.s32 %s184, 1
      %s186 = scalar_select %p183, %s184, %s185
      %p189 = pneg %p183
      %p190 = scmp.eq.s32.totalorder %s22, 1
      %p191 = por %p189, %p190
      %p192 = scmp.ne.s32.totalorder %s184, %s187
      %p193 = scmp.eq.s32.totalorder %s22, 0
      %p194 = por %p192, %p193
      %p195 = scmp.ne.s32.totalorder %s184, %s187
      %p196 = scmp.eq.s32.totalorder %s27, 1
      %p197 = por %p195, %p196
      %p198 = scmp.ne.s32.totalorder %s187, %s188
      %p199 = scmp.eq.s32.totalorder %s27, 0
      %p200 = por %p198, %p199
      %p201 = scmp.ne.s32.totalorder %s187, %s188
      %p202 = scmp.eq.s32.totalorder %s28, 1
      %p203 = por %p201, %p202
      %p205 = scmp.ne.s32.totalorder %s188, %s204
      %p206 = scmp.eq.s32.totalorder %s28, 0
      %p207 = por %p205, %p206
      %p208 = scmp.le.s32.totalorder 1, %s22
      %p209 = scmp.lt.s32.totalorder %s22, 3
      %p210 = pnand %p208, %p209
      %p211 = pneg %p210
      // Predicated region
      $region9: #{down_block_forward.2} parent=5 // pred_check
        _
      $region10: #{down_block_forward.2} parent=5 // pred_check_branch
        %213 = sbr.rel (%p210) target = $region12
      $region11: #{down_block_forward.2} parent=5 // pred_region
        %s214 = ssub.s32 %s22, 1
        // Predicated region
        $region13: #{down_block_forward.2} parent=11 // pred_check
          %p215 = pneg %p69
        $region14: #{down_block_forward.2} parent=11 // pred_check_branch
          %217 = sbr.rel (%p215) target = $region16
        $region15: #{down_block_forward.2} parent=11 // pred_region
          %s219 = ssub.s32 256, 256
          %220 = vsyncadd [#allocation7], %s219
          %s221 = sshll.u32 [#allocation6], 4
          %s222 = int_to_ptr.vmem [resolvable:$true] %s221
          %227 = dma.hbm_to_vmem [thread:$0]  %s1, 256, %s222, [#allocation7], 64, 64, 4
        $region16: #{down_block_forward.2} parent=11 // pred_fallthru
          _
        // Predicated region
        $region17: #{down_block_forward.2} parent=11 // pred_check
          %p228 = pneg %p90
        $region18: #{down_block_forward.2} parent=11 // pred_check_branch
          %230 = sbr.rel (%p228) target = $region20
        $region19: #{down_block_forward.2} parent=11 // pred_region
          %s232 = ssub.s32 512, 512
          %233 = vsyncadd [#allocation7], %s232
          %s234 = sshll.u32 [#allocation8], 4
          %s235 = int_to_ptr.vmem [resolvable:$true] %s234
          %240 = dma.hbm_to_vmem [thread:$0]  %s2, 512, %s235, [#allocation7], 128, 128, 8
        $region20: #{down_block_forward.2} parent=11 // pred_fallthru
          _
        // Predicated region
        $region21: #{down_block_forward.2} parent=11 // pred_check
          %p241 = pneg %p111
        $region22: #{down_block_forward.2} parent=11 // pred_check_branch
          %243 = sbr.rel (%p241) target = $region24
        $region23: #{down_block_forward.2} parent=11 // pred_region
          %s245 = ssub.s32 512, 512
          %246 = vsyncadd [#allocation10], %s245
          %s247 = sshll.u32 [#allocation9], 4
          %s248 = int_to_ptr.vmem [resolvable:$true] %s247
          %253 = dma.hbm_to_vmem [thread:$0]  %s3, 512, %s248, [#allocation10], 128, 128, 8
        $region24: #{down_block_forward.2} parent=11 // pred_fallthru
          _
        // Predicated region
        $region25: #{down_block_forward.2} parent=11 // pred_check
          %p254 = pneg %p132
        $region26: #{down_block_forward.2} parent=11 // pred_check_branch
          %256 = sbr.rel (%p254) target = $region28
        $region27: #{down_block_forward.2} parent=11 // pred_region
          %s258 = ssub.s32 512, 512
          %259 = vsyncadd [#allocation10], %s258
          %s260 = sshll.u32 [#allocation11], 4
          %s261 = int_to_ptr.vmem [resolvable:$true] %s260
          %266 = dma.hbm_to_vmem [thread:$0]  %s4, 512, %s261, [#allocation10], 128, 128, 8
        $region28: #{down_block_forward.2} parent=11 // pred_fallthru
          _
        // Predicated region
        $region29: #{down_block_forward.2} parent=11 // pred_check
          %p267 = pneg %p153
        $region30: #{down_block_forward.2} parent=11 // pred_check_branch
          %269 = sbr.rel (%p267) target = $region32
        $region31: #{down_block_forward.2} parent=11 // pred_region
          %s271 = ssub.s32 512, 512
          %272 = vsyncadd [#allocation13], %s271
          %s273 = sshll.u32 [#allocation12], 4
          %s274 = int_to_ptr.vmem [resolvable:$true] %s273
          %279 = dma.hbm_to_vmem [thread:$0]  %s5, 512, %s274, [#allocation13], 128, 128, 8
        $region32: #{down_block_forward.2} parent=11 // pred_fallthru
          _
        // Predicated region
        $region33: #{down_block_forward.2} parent=11 // pred_check
          %p280 = pneg %p174
        $region34: #{down_block_forward.2} parent=11 // pred_check_branch
          %282 = sbr.rel (%p280) target = $region36
        $region35: #{down_block_forward.2} parent=11 // pred_region
          %s284 = ssub.s32 16, 16
          %285 = vsyncadd [#allocation13], %s284
          %s287 = sshll.u32 [#allocation14], 4
          %s288 = int_to_ptr.vmem [resolvable:$true] %s287
          %290 = dma.hbm_to_vmem [thread:$0]  %s6, 16, %s288, [#allocation13]
        $region36: #{down_block_forward.2} parent=11 // pred_fallthru
          _
      $region12: #{down_block_forward.2} parent=5 // pred_fallthru
        _
      %p291 = scmp.lt.s32.totalorder %s22, 2
      // Predicated region
      $region37: #{down_block_forward.2} parent=5 // pred_check
        %p292 = pneg %p291
      $region38: #{down_block_forward.2} parent=5 // pred_check_branch
        %294 = sbr.rel (%p292) target = $region40
      $region39: #{down_block_forward.2} parent=5 // pred_region
        // Predicated region
        $region41: #{down_block_forward.2} parent=39 // pred_check
          %p295 = pneg %p42
        $region42: #{down_block_forward.2} parent=39 // pred_check_branch
          %297 = sbr.rel (%p295) target = $region44
        $region43: #{down_block_forward.2} parent=39 // pred_region
          %s298 = sand.u32 %s32, 1
          %s299 = scalar_lea.sflag [#allocation4], %s298
          %s300 = sand.u32 %s32, 1
          %s301 = smul.addr %s300, 8
          %s302 = scalar_lea.vmem [#allocation3], %s301
          %s304 = ssub.s32 128, 128
          %305 = vsyncadd %s299, %s304
          %s306 = smul.addr %s22, 2
          %s307 = smul.addr %s306, 64
          %s308 = scalar_lea.hbm %s0, %s307
          %s309 = sshll.u32 %s302, 4
          %s310 = int_to_ptr.vmem [resolvable:$true] %s309
          %315 = dma.hbm_to_vmem [thread:$0]  %s308, 128, %s310, %s299, 64, 64, 4
        $region44: #{down_block_forward.2} parent=39 // pred_fallthru
          _
      $region40: #{down_block_forward.2} parent=5 // pred_fallthru
        _
      %p316 = scmp.le.s32.totalorder 1, %s22
      %p317 = scmp.lt.s32.totalorder %s22, 3
      %p318 = pnand %p316, %p317
      %p319 = pneg %p318
      // Predicated region
      $region45: #{down_block_forward.2} parent=5 // pred_check
        _
      $region46: #{down_block_forward.2} parent=5 // pred_check_branch
        %321 = sbr.rel (%p318) target = $region48
      $region47: #{down_block_forward.2} parent=5 // pred_region
        %s322 = ssub.s32 %s22, 1
        %s323 = sand.u32 %s35, 1
        %s324 = scalar_lea.sflag [#allocation4], %s323
        %s325 = sand.u32 %s35, 1
        %s326 = smul.addr %s325, 8
        %s327 = scalar_lea.vmem [#allocation3], %s326
        // Predicated region
        $region49: #{down_block_forward.2} parent=47 // pred_check
          %p328 = pneg %p48
        $region50: #{down_block_forward.2} parent=47 // pred_check_branch
          %330 = sbr.rel (%p328) target = $region52
        $region51: #{down_block_forward.2} parent=47 // pred_region
          %331 = dma.done %s324, 128
        $region52: #{down_block_forward.2} parent=47 // pred_fallthru
          _
        // Predicated region
        $region53: #{down_block_forward.2} parent=47 // pred_check
          %p332 = pneg %p69
        $region54: #{down_block_forward.2} parent=47 // pred_check_branch
          %334 = sbr.rel (%p332) target = $region56
        $region55: #{down_block_forward.2} parent=47 // pred_region
          %335 = dma.done [#allocation7], 256
        $region56: #{down_block_forward.2} parent=47 // pred_fallthru
          _
        // Predicated region
        $region57: #{down_block_forward.2} parent=47 // pred_check
          %p336 = pneg %p90
        $region58: #{down_block_forward.2} parent=47 // pred_check_branch
          %338 = sbr.rel (%p336) target = $region60
        $region59: #{down_block_forward.2} parent=47 // pred_region
          %339 = dma.done [#allocation7], 512
        $region60: #{down_block_forward.2} parent=47 // pred_fallthru
          _
        // Predicated region
        $region61: #{down_block_forward.2} parent=47 // pred_check
          %p340 = pneg %p111
        $region62: #{down_block_forward.2} parent=47 // pred_check_branch
          %342 = sbr.rel (%p340) target = $region64
        $region63: #{down_block_forward.2} parent=47 // pred_region
          %343 = dma.done [#allocation10], 512
        $region64: #{down_block_forward.2} parent=47 // pred_fallthru
          _
        // Predicated region
        $region65: #{down_block_forward.2} parent=47 // pred_check
          %p344 = pneg %p132
        $region66: #{down_block_forward.2} parent=47 // pred_check_branch
          %346 = sbr.rel (%p344) target = $region68
        $region67: #{down_block_forward.2} parent=47 // pred_region
          %347 = dma.done [#allocation10], 512
        $region68: #{down_block_forward.2} parent=47 // pred_fallthru
          _
        // Predicated region
        $region69: #{down_block_forward.2} parent=47 // pred_check
          %p348 = pneg %p153
        $region70: #{down_block_forward.2} parent=47 // pred_check_branch
          %350 = sbr.rel (%p348) target = $region72
        $region71: #{down_block_forward.2} parent=47 // pred_region
          %351 = dma.done [#allocation13], 512
        $region72: #{down_block_forward.2} parent=47 // pred_fallthru
          _
        // Predicated region
        $region73: #{down_block_forward.2} parent=47 // pred_check
          %p352 = pneg %p174
        $region74: #{down_block_forward.2} parent=47 // pred_check_branch
          %354 = sbr.rel (%p352) target = $region76
        $region75: #{down_block_forward.2} parent=47 // pred_region
          %355 = dma.done [#allocation13], 16
        $region76: #{down_block_forward.2} parent=47 // pred_fallthru
          _
        %s356 = sand.u32 %s35, 1
        %s357 = scalar_lea.sflag [#allocation4], %s356
        %s358 = sand.u32 %s35, 1
        %s359 = smul.addr %s358, 8
        %s360 = scalar_lea.vmem [#allocation3], %s359
        %p361 = pneg %p48
        %p362 = pneg %p45
        %p363 = pneg %p69
        %p364 = pneg %p66
        %p365 = pneg %p90
        %p366 = pneg %p87
        %p367 = pneg %p111
        %p368 = pneg %p108
        %p369 = pneg %p132
        %p370 = pneg %p129
        %p371 = pneg %p153
        %p372 = pneg %p150
        %p373 = pneg %p174
        %p374 = pneg %p171
        %p375 = pneg %p200
        %p376 = pneg %p197
        %s377 = sand.u32 %s187, 1
        %s378 = scalar_lea.sflag [#allocation5], %s377
        %s379 = sand.u32 %s187, 1
        %s380 = smul.addr %s379, 16
        %s381 = scalar_lea.vmem [#allocation15], %s380
        %v383 = vld [vmem:[#allocation6] sm:$0xf]
        %v384 = vld [vmem:[#allocation6 + $0x4] sm:$0xf]
        %v385 = vld [vmem:[#allocation6 + $0x8] sm:$0xf]
        %v386 = vld [vmem:[#allocation6 + $0xc] sm:$0xf]
        %v387 = vld [vmem:[#allocation8] sm:$0xff]
        %v388 = vld [vmem:[#allocation8 + $0x8] sm:$0xff]
        %v389 = vld [vmem:[#allocation8 + $0x10] sm:$0xff]
        %v390 = vld [vmem:[#allocation8 + $0x18] sm:$0xff]
        %v391 = vld [vmem:[#allocation14] sm:$0x1]
        %v392 = vld [vmem:[%s327] sm:$0xf]
        %v393 = vld [vmem:[%s327 + $0x4] sm:$0xf]
        %v396 = vunpack.c.l.b16 %v392
        %v397 = vunpack.c.l.b16 %v393
        %v398 = vpack.c.b16 %v397, %v396
        %400 = vrot.lane.b32.xlu0 %v398, 127
        %v401 = vpop.permute.xlu0 %400
        %403 = vrot.lane.b32.xlu0 %v398, 118
        %v404 = vpop.permute.xlu0 %403
        %406 = vrot.lane.b32.xlu0 %v398, 117
        %v407 = vpop.permute.xlu0 %406
        %410 = vset.pattern.permute.xlu0 0
        %411 = vperm.xlu0 %410, %v387
        %v412 = vpop.permute.xlu0 %411
        %415 = vset.pattern.permute.xlu0 0
        %416 = vperm.xlu0 %415, %v388
        %v417 = vpop.permute.xlu0 %416
        %420 = vset.pattern.permute.xlu0 0
        %421 = vperm.xlu0 %420, %v389
        %v422 = vpop.permute.xlu0 %421
        %425 = vset.pattern.permute.xlu0 0
        %426 = vperm.xlu0 %425, %v390
        %v427 = vpop.permute.xlu0 %426
        %v433 = vunpack.c.l.b16 %v383
        %v434 = vunpack.c.l.b16 %v384
        %v435 = vunpack.c.l.b16 %v385
        %v436 = vunpack.c.l.b16 %v386
        %v437 = vpack.c.b16 %v434, %v433
        %v438 = vpack.c.b16 %v436, %v435
        %vm439 = vcmask 523264
        %v441 = vsel %vm439, %v437, 0
        %v444 = vsel %vm439, %v438, 0
        %446 = vmatprep.subr.bf16.mxu0 0
        %447 = vmatpush1.bf16.msra.mxu0 %v398
        %448 = vmatprep.subr.bf16.mxu0 0
        %449 = vmatpush1.bf16.msra.mxu0 %v401
        %450 = vmatprep.subr.bf16.mxu0 0
        %451 = vmatpush1.bf16.msra.mxu0 %v404
        %452 = vmatprep.subr.bf16.mxu0 0
        %453 = vmatpush1.bf16.msra.mxu0 %v407
        %454 = vmatprep.subr.bf16.mxu0 0
        %455 = vmatpush1.bf16.msra.mxu0 0
        %456 = vmatprep.subr.bf16.mxu0 0
        %457 = vmatpush1.bf16.msra.mxu0 0
        %458 = vmatprep.subr.bf16.mxu0 0
        %459 = vmatpush1.bf16.msra.mxu0 0
        %460 = vmatprep.subr.bf16.mxu0 0
        %461 = vmatpush1.bf16.msra.mxu0 0
        %462 = vmatprep.subr.bf16.mxu0 0
        %463 = vmatpush1.bf16.msra.mxu0 0
        %464 = vmatprep.subr.bf16.mxu0 0
        %465 = vmatpush1.bf16.msra.mxu0 0
        %466 = vmatprep.subr.bf16.mxu0 0
        %467 = vmatpush1.bf16.msra.mxu0 0
        %468 = vmatprep.subr.bf16.mxu0 0
        %469 = vmatpush1.bf16.msra.mxu0 0
        %470 = vmatprep.subr.bf16.mxu0 0
        %471 = vmatpush1.bf16.msra.mxu0 0
        %472 = vmatprep.subr.bf16.mxu0 0
        %473 = vmatpush1.bf16.msra.mxu0 0
        %474 = vmatprep.subr.bf16.mxu0 0
        %475 = vmatpush1.bf16.msra.mxu0 0
        %476 = vmatprep.subr.bf16.mxu0 0
        %477 = vmatpush1.bf16.msra.mxu0 0
        %478 = vmatprep.mubr.bf16.mxu0 0
        %479 = vmatmul.mubr.bf16.gmra.mrb[0].mxu0 %v441
        %v480 = vpop.f32.mrb[0].mxu0
        %v481 = vadd.f32 %v412, %v480
        %v482 = vpop.f32.mrb[0].mxu0
        %v483 = vpop.f32.mrb[0].mxu0
        %v484 = vadd.f32 %v417, %v483
        %v485 = vpop.f32.mrb[0].mxu0
        %486 = vmatprep.mubr.bf16.mxu0 0
        %487 = vmatmul.mubr.bf16.gmra.mrb[0].mxu0 %v444
        %v488 = vpop.f32.mrb[0].mxu0
        %v489 = vadd.f32 %v422, %v488
        %v490 = vpop.f32.mrb[0].mxu0
        %v491 = vpop.f32.mrb[0].mxu0
        %v492 = vadd.f32 %v427, %v491
        %v493 = vpop.f32.mrb[0].mxu0
        %494 = vdwg.mxu0
        %vm495 = vcmask 654336
        %496 = vst.msk [vmem:[#allocation2] sm:$0xff] %vm495, %v481
        %497 = vst.msk [vmem:[#allocation2 + $0x8] sm:$0xff] %vm495, %v484
        %498 = vst.msk [vmem:[#allocation2 + $0x10] sm:$0xff] %vm495, %v489
        %499 = vst.msk [vmem:[#allocation2 + $0x18] sm:$0xff] %vm495, %v492
        %v501 = vlaneseq
        %v502 = vshrl.u32 %v501, 7
        %v503 = vsub.s32 0, %v502
        %v504 = vrot.slane %v391, %v503
        %v506 = vmul.f32 %v481, %v504
        %v507 = vmul.f32 %v484, %v504
        %v508 = vmul.f32 %v489, %v504
        %v509 = vmul.f32 %v492, %v504
        %v510 = vsel %vm495, %v506, 0.0
        %511 = vadd.xlane.f32.xlu0 %v510
        %v512 = vpop.xlane.xlu0 %511
        %v513 = vsel %vm495, %v507, 0.0
        %514 = vadd.xlane.f32.xlu0 %v513
        %v515 = vpop.xlane.xlu0 %514
        %v516 = vsel %vm495, %v508, 0.0
        %517 = vadd.xlane.f32.xlu0 %v516
        %v518 = vpop.xlane.xlu0 %517
        %v519 = vsel %vm495, %v509, 0.0
        %520 = vadd.xlane.f32.xlu0 %v519
        %v521 = vpop.xlane.xlu0 %520
        %v522 = vadd.f32 %v512, 0.0
        %v523 = vadd.f32 %v515, 0.0
        %v524 = vadd.f32 %v518, 0.0
        %v525 = vadd.f32 %v521, 0.0
        %v526 = vmul.f32 %v506, %v481
        %v527 = vmul.f32 %v507, %v484
        %v528 = vmul.f32 %v508, %v489
        %v529 = vmul.f32 %v509, %v492
        %v530 = vsel %vm495, %v526, 0.0
        %531 = vadd.xlane.f32.xlu0 %v530
        %v532 = vpop.xlane.xlu0 %531
        %v533 = vsel %vm495, %v527, 0.0
        %534 = vadd.xlane.f32.xlu0 %v533
        %v535 = vpop.xlane.xlu0 %534
        %v536 = vsel %vm495, %v528, 0.0
        %537 = vadd.xlane.f32.xlu0 %v536
        %v538 = vpop.xlane.xlu0 %537
        %v539 = vsel %vm495, %v529, 0.0
        %540 = vadd.xlane.f32.xlu0 %v539
        %v541 = vpop.xlane.xlu0 %540
        %v542 = vadd.f32 %v532, 0.0
        %v543 = vadd.f32 %v535, 0.0
        %v544 = vadd.f32 %v538, 0.0
        %v545 = vadd.f32 %v541, 0.0
        %vm546 = vcmask 7168
        %v547 = vsel %vm546, %v522, %v542
        %v548 = vsel %vm546, %v523, %v543
        %v549 = vsel %vm546, %v524, %v544
        %v550 = vsel %vm546, %v525, %v545
        %v551 = vld [vmem:[#allocation12] sm:$0xff]
        %v552 = vld [vmem:[#allocation12 + $0x8] sm:$0xff]
        %v553 = vld [vmem:[#allocation12 + $0x10] sm:$0xff]
        %v554 = vld [vmem:[#allocation12 + $0x18] sm:$0xff]
        %vm555 = vcmask 261120
        %v557 = vsel %vm555, %v551, 0
        %v560 = vsel %vm555, %v552, 0
        %v563 = vsel %vm555, %v553, 0
        %v566 = vsel %vm555, %v554, 0
        %568 = vmatprep.subr.mxu0 0.0
        %569 = vmatpush1.msra.mxu0 %v547
        %570 = vmatprep.subr.mxu0 0.0
        %571 = vmatpush1.msra.mxu0 %v548
        %572 = vmatprep.subr.mxu0 0.0
        %573 = vmatpush1.msra.mxu0 %v549
        %574 = vmatprep.subr.mxu0 0.0
        %575 = vmatpush1.msra.mxu0 %v550
        %576 = vmatprep.subr.mxu0 0.0
        %577 = vmatpush1.msra.mxu0 0.0
        %578 = vmatprep.subr.mxu0 0.0
        %579 = vmatpush1.msra.mxu0 0.0
        %580 = vmatprep.subr.mxu0 0.0
        %581 = vmatpush1.msra.mxu0 0.0
        %582 = vmatprep.subr.mxu0 0.0
        %583 = vmatpush1.msra.mxu0 0.0
        %584 = vmatprep.subr.mxu0 0.0
        %585 = vmatpush1.msra.mxu0 0.0
        %586 = vmatprep.subr.mxu0 0.0
        %587 = vmatpush1.msra.mxu0 0.0
        %588 = vmatprep.subr.mxu0 0.0
        %589 = vmatpush1.msra.mxu0 0.0
        %590 = vmatprep.subr.mxu0 0.0
        %591 = vmatpush1.msra.mxu0 0.0
        %592 = vmatprep.subr.mxu0 0.0
        %593 = vmatpush1.msra.mxu0 0.0
        %594 = vmatprep.subr.mxu0 0.0
        %595 = vmatpush1.msra.mxu0 0.0
        %596 = vmatprep.subr.mxu0 0.0
        %597 = vmatpush1.msra.mxu0 0.0
        %598 = vmatprep.subr.mxu0 0.0
        %599 = vmatpush1.msra.mxu0 0.0
        %600 = vmatprep.subr.mxu0 0.0
        %601 = vmatpush1.msra.mxu0 0.0
        %602 = vmatprep.subr.mxu0 0.0
        %603 = vmatpush1.msra.mxu0 0.0
        %604 = vmatprep.subr.mxu0 0.0
        %605 = vmatpush1.msra.mxu0 0.0
        %606 = vmatprep.subr.mxu0 0.0
        %607 = vmatpush1.msra.mxu0 0.0
        %608 = vmatprep.subr.mxu0 0.0
        %609 = vmatpush1.msra.mxu0 0.0
        %610 = vmatprep.subr.mxu0 0.0
        %611 = vmatpush1.msra.mxu0 0.0
        %612 = vmatprep.subr.mxu0 0.0
        %613 = vmatpush1.msra.mxu0 0.0
        %614 = vmatprep.subr.mxu0 0.0
        %615 = vmatpush1.msra.mxu0 0.0
        %616 = vmatprep.subr.mxu0 0.0
        %617 = vmatpush1.msra.mxu0 0.0
        %618 = vmatprep.subr.mxu0 0.0
        %619 = vmatpush1.msra.mxu0 0.0
        %620 = vmatprep.subr.mxu0 0.0
        %621 = vmatpush1.msra.mxu0 0.0
        %622 = vmatprep.subr.mxu0 0.0
        %623 = vmatpush1.msra.mxu0 0.0
        %624 = vmatprep.subr.mxu0 0.0
        %625 = vmatpush1.msra.mxu0 0.0
        %626 = vmatprep.subr.mxu0 0.0
        %627 = vmatpush1.msra.mxu0 0.0
        %628 = vmatprep.subr.mxu0 0.0
        %629 = vmatpush1.msra.mxu0 0.0
        %630 = vmatprep.subr.mxu0 0.0
        %631 = vmatpush1.msra.mxu0 0.0
        %632 = vmatprep.mubr.f32.mxu0 0.0
        %633 = vmatmul.mubr.f32.gmra.mrb[0].mxu0 %v557
        %v634 = vpop.f32.mrb[0].mxu0
        %v635 = vadd.f32 0.0, %v634
        %v636 = vpop.f32.mrb[0].mxu0
        %637 = vmatprep.mubr.f32.mxu0 0.0
        %638 = vmatmul.mubr.f32.gmra.mrb[0].mxu0 %v560
        %v639 = vpop.f32.mrb[0].mxu0
        %v640 = vadd.f32 0.0, %v639
        %v641 = vpop.f32.mrb[0].mxu0
        %642 = vmatprep.mubr.f32.mxu0 0.0
        %643 = vmatmul.mubr.f32.gmra.mrb[0].mxu0 %v563
        %v644 = vpop.f32.mrb[0].mxu0
        %v645 = vadd.f32 0.0, %v644
        %v646 = vpop.f32.mrb[0].mxu0
        %647 = vmatprep.mubr.f32.mxu0 0.0
        %648 = vmatmul.mubr.f32.gmra.mrb[0].mxu0 %v566
        %v649 = vpop.f32.mrb[0].mxu0
        %v650 = vadd.f32 0.0, %v649
        %v651 = vpop.f32.mrb[0].mxu0
        %652 = vdwg.mxu0
        %v653 = vmul.f32 %v635, 0.0078125
        %v654 = vmul.f32 %v640, 0.0078125
        %v655 = vmul.f32 %v645, 0.0078125
        %v656 = vmul.f32 %v650, 0.0078125
        %v657 = vmul.f32 %v653, %v653
        %v658 = vmul.f32 %v654, %v654
        %v659 = vmul.f32 %v655, %v655
        %v660 = vmul.f32 %v656, %v656
        %665 = vrot.lane.b32.xlu0 %v657, 1
        %v666 = vpop.permute.xlu0 %665
        %667 = vrot.lane.b32.xlu0 %v658, 1
        %v668 = vpop.permute.xlu0 %667
        %669 = vrot.lane.b32.xlu0 %v659, 1
        %v670 = vpop.permute.xlu0 %669
        %671 = vrot.lane.b32.xlu0 %v660, 1
        %v672 = vpop.permute.xlu0 %671
        %v677 = vsub.f32 %v653, %v666
        %v678 = vsub.f32 %v654, %v668
        %v679 = vsub.f32 %v655, %v670
        %v680 = vsub.f32 %v656, %v672
        %v681 = vmax.f32 %v677, 0.0
        %v682 = vmax.f32 %v678, 0.0
        %v683 = vmax.f32 %v679, 0.0
        %v684 = vmax.f32 %v680, 0.0
        %v685 = vld [vmem:[#allocation9] sm:$0xff]
        %v686 = vld [vmem:[#allocation9 + $0x8] sm:$0xff]
        %v687 = vld [vmem:[#allocation9 + $0x10] sm:$0xff]
        %v688 = vld [vmem:[#allocation9 + $0x18] sm:$0xff]
        %v689 = vadd.f32 %v681, 1e-05
        %v690 = vadd.f32 %v682, 1e-05
        %v691 = vadd.f32 %v683, 1e-05
        %v692 = vadd.f32 %v684, 1e-05
        %v693 = vrsqrt.pop %v689
        %v694 = vrsqrt.pop %v690
        %v695 = vrsqrt.pop %v691
        %v696 = vrsqrt.pop %v692
        %701 = vrot.lane.b32.xlu0 %v693, 127
        %v702 = vpop.permute.xlu0 %701
        %703 = vrot.lane.b32.xlu0 %v694, 127
        %v704 = vpop.permute.xlu0 %703
        %705 = vrot.lane.b32.xlu0 %v695, 127
        %v706 = vpop.permute.xlu0 %705
        %707 = vrot.lane.b32.xlu0 %v696, 127
        %v708 = vpop.permute.xlu0 %707
        %v713 = vmul.f32 %v685, %v702
        %v714 = vmul.f32 %v686, %v704
        %v715 = vmul.f32 %v687, %v706
        %v716 = vmul.f32 %v688, %v708
        %v717 = vld [vmem:[#allocation11] sm:$0xff]
        %v718 = vld [vmem:[#allocation11 + $0x8] sm:$0xff]
        %v719 = vld [vmem:[#allocation11 + $0x10] sm:$0xff]
        %v720 = vld [vmem:[#allocation11 + $0x18] sm:$0xff]
        %v721 = vmul.f32 %v653, %v713
        %v722 = vmul.f32 %v654, %v714
        %v723 = vmul.f32 %v655, %v715
        %v724 = vmul.f32 %v656, %v716
        %v725 = vsub.f32 %v717, %v721
        %v726 = vsub.f32 %v718, %v722
        %v727 = vsub.f32 %v719, %v723
        %v728 = vsub.f32 %v720, %v724
        %vm729 = vcmask 84992
        %730 = vst.msk [vmem:[%s381] sm:$0xf] %vm729, 0
        %731 = vst.msk [vmem:[%s381 + $0x4] sm:$0xf] %vm729, 0
        %732 = vst.msk [vmem:[%s381 + $0x8] sm:$0xf] %vm729, 0
        %733 = vst.msk [vmem:[%s381 + $0xc] sm:$0xf] %vm729, 0
        %vm734 = vcmask 896728
        %735 = vst.msk [vmem:[%s381] sm:$0xf] %vm734, 0
        %736 = vst.msk [vmem:[%s381 + $0x4] sm:$0xf] %vm734, 0
        %737 = vst.msk [vmem:[%s381 + $0x8] sm:$0xf] %vm734, 0
        %738 = vst.msk [vmem:[%s381 + $0xc] sm:$0xf] %vm734, 0
        %v739 = vld [vmem:[#allocation2] sm:$0xff]
        %v740 = vld [vmem:[#allocation2 + $0x8] sm:$0xff]
        %v741 = vld [vmem:[#allocation2 + $0x10] sm:$0xff]
        %v742 = vld [vmem:[#allocation2 + $0x18] sm:$0xff]
        %744 = vset.pattern.permute.xlu0 0
        %745 = vperm.xlu0 %744, %v713
        %v746 = vpop.permute.xlu0 %745
        %749 = vset.pattern.permute.xlu0 0
        %750 = vperm.xlu0 %749, %v714
        %v751 = vpop.permute.xlu0 %750
        %754 = vset.pattern.permute.xlu0 0
        %755 = vperm.xlu0 %754, %v715
        %v756 = vpop.permute.xlu0 %755
        %759 = vset.pattern.permute.xlu0 0
        %760 = vperm.xlu0 %759, %v716
        %v761 = vpop.permute.xlu0 %760
        %v763 = vmul.f32 %v739, %v746
        %v764 = vmul.f32 %v740, %v751
        %v765 = vmul.f32 %v741, %v756
        %v766 = vmul.f32 %v742, %v761
        %768 = vset.pattern.permute.xlu0 0
        %769 = vperm.xlu0 %768, %v725
        %v770 = vpop.permute.xlu0 %769
        %773 = vset.pattern.permute.xlu0 0
        %774 = vperm.xlu0 %773, %v726
        %v775 = vpop.permute.xlu0 %774
        %778 = vset.pattern.permute.xlu0 0
        %779 = vperm.xlu0 %778, %v727
        %v780 = vpop.permute.xlu0 %779
        %783 = vset.pattern.permute.xlu0 0
        %784 = vperm.xlu0 %783, %v728
        %v785 = vpop.permute.xlu0 %784
        %v787 = vadd.f32 %v763, %v770
        %v788 = vadd.f32 %v764, %v775
        %v789 = vadd.f32 %v765, %v780
        %v790 = vadd.f32 %v766, %v785
        %vm791 = vcmp.gt.f32.partialorder %v787, 0.0
        %vm792 = vcmp.gt.f32.partialorder %v788, 0.0
        %vm793 = vcmp.gt.f32.partialorder %v789, 0.0
        %vm794 = vcmp.gt.f32.partialorder %v790, 0.0
        %v795 = vmul.f32 %v787, 0.2
        %v796 = vmul.f32 %v788, 0.2
        %v797 = vmul.f32 %v789, 0.2
        %v798 = vmul.f32 %v790, 0.2
        %v799 = vsel %vm791, %v787, %v795
        %v800 = vsel %vm792, %v788, %v796
        %v801 = vsel %vm793, %v789, %v797
        %v802 = vsel %vm794, %v790, %v798
        %v803 = vmul.f32 %v799, %v504
        %v804 = vmul.f32 %v800, %v504
        %v805 = vmul.f32 %v801, %v504
        %v806 = vmul.f32 %v802, %v504
        %v807 = vpack.c.bf16 %v804, %v803
        %v808 = vpack.c.bf16 %v806, %v805
        %v811 = vunpack.c.l.b16 %v807
        %v812 = vunpack.c.h.b16 %v807
        %v813 = vunpack.c.l.b16 %v808
        %v814 = vunpack.c.h.b16 %v808
        %v815 = vpack.c.b16 %v811, %v811
        %v816 = vpack.c.b16 %v812, %v812
        %v817 = vpack.c.b16 %v813, %v813
        %v818 = vpack.c.b16 %v814, %v814
        %819 = vrot.lane.b32.xlu0 %v815, 11
        %v820 = vpop.permute.xlu0 %819
        %821 = vrot.lane.b32.xlu0 %v816, 11
        %v822 = vpop.permute.xlu0 %821
        %823 = vrot.lane.b32.xlu0 %v817, 11
        %v824 = vpop.permute.xlu0 %823
        %825 = vrot.lane.b32.xlu0 %v818, 11
        %v826 = vpop.permute.xlu0 %825
        %vm831 = vcmask 740440
        %832 = vst.msk [vmem:[%s381] sm:$0xf] %vm831, %v820
        %833 = vst.msk [vmem:[%s381 + $0x4] sm:$0xf] %vm831, %v822
        %834 = vst.msk [vmem:[%s381 + $0x8] sm:$0xf] %vm831, %v824
        %835 = vst.msk [vmem:[%s381 + $0xc] sm:$0xf] %vm831, %v826
        %s836 = sand.u32 %s187, 1
        %s837 = scalar_lea.sflag [#allocation5], %s836
        %s838 = sand.u32 %s187, 1
        %s839 = smul.addr %s838, 16
        %s840 = scalar_lea.vmem [#allocation15], %s839
        // Predicated region
        $region77: #{down_block_forward.2} parent=47 // pred_check
          %p841 = pneg %p197
        $region78: #{down_block_forward.2} parent=47 // pred_check_branch
          %843 = sbr.rel (%p841) target = $region80
        $region79: #{down_block_forward.2} parent=47 // pred_region
          %s845 = ssub.s32 256, 256
          %846 = vsyncadd %s837, %s845
          %s847 = smul.addr %s27, 4
          %s848 = smul.addr %s847, 64
          %s849 = scalar_lea.hbm %s7, %s848
          %s850 = sshll.u32 %s840, 4
          %s851 = int_to_ptr.vmem [resolvable:$true] %s850
          %856 = dma.vmem_to_hbm [thread:$0]  %s851, 256, %s849, %s837, 64, 64, 4
        $region80: #{down_block_forward.2} parent=47 // pred_fallthru
          _
      $region48: #{down_block_forward.2} parent=5 // pred_fallthru
        _
      %p857 = scmp.le.s32.totalorder 2, %s22
      // Predicated region
      $region81: #{down_block_forward.2} parent=5 // pred_check
        %p858 = pneg %p857
      $region82: #{down_block_forward.2} parent=5 // pred_check_branch
        %860 = sbr.rel (%p858) target = $region84
      $region83: #{down_block_forward.2} parent=5 // pred_region
        %s861 = ssub.s32 %s22, 2
        // Predicated region
        $region85: #{down_block_forward.2} parent=83 // pred_check
          %p862 = pneg %p203
        $region86: #{down_block_forward.2} parent=83 // pred_check_branch
          %864 = sbr.rel (%p862) target = $region88
        $region87: #{down_block_forward.2} parent=83 // pred_region
          %s865 = sand.u32 %s188, 1
          %s866 = scalar_lea.sflag [#allocation5], %s865
          %s867 = sand.u32 %s188, 1
          %s868 = smul.addr %s867, 16
          %s869 = scalar_lea.vmem [#allocation15], %s868
          %870 = dma.done %s866, 256
        $region88: #{down_block_forward.2} parent=83 // pred_fallthru
          _
      $region84: #{down_block_forward.2} parent=5 // pred_fallthru
        _
    $region6: #{down_block_forward.2} parent=1 // loop_footer
      %s26 = sadd.s32 1, %s22
    $region7: #{down_block_forward.2} parent=1 // loop_footer_branch
      %21 = sbr.rel target = $region3
    $region8: #{down_block_forward.2} parent=1 // loop_exit
      _
    %871 = vsyncpa [#allocation4], 1
    %s872 = scalar_lea.sflag [#allocation4], 1
    %873 = vsyncpa %s872, 1
    %874 = vsyncpa [#allocation7], 1
    %875 = vsyncpa [#allocation10], 1
    %876 = vsyncpa [#allocation13], 1
    %877 = vsyncpa [#allocation5], 1
    %s878 = scalar_lea.sflag [#allocation5], 1
    %879 = vsyncpa %s878, 1

</llo_original>
